<compile_context>
chip_gen: v5e
topology: v5e:2x2
jax: 0.10.0
libtpu: 0.0.40
codegen_flags: <defaults>
</compile_context>

<pallas_src>
import jax
import jax.numpy as jnp
import numpy as np
from jax.experimental import pallas as pl
from jax.experimental.pallas import tpu as pltpu


def _round_up(x, m):
    return ((x + m - 1) // m) * m


def _round_down(x, m):
    return (x // m) * m


def _sublane_multiple(dtype) -> int:
    itemsize = jnp.dtype(dtype).itemsize
    return {4: 8, 2: 16, 1: 32}.get(itemsize, 8)


def _choose_block_b(B, D, L, dtype):
    """Dtype- and VMEM-aware batch tile size."""
    itemsize = jnp.dtype(dtype).itemsize
    sm = _sublane_multiple(dtype)
    bp0 = _round_up(B, sm)
    # Per-buffer budget for the x tile; the pipeline double-buffers it, so the
    # dominant allocation stays <= 24 MiB (well inside v7x's 64 MiB VMEM and
    # trivially inside v5e/v6e's 128 MiB).
    x_tile_budget = 12 * 1024 * 1024
    cap = max(sm, _round_down(x_tile_budget // max(1, D * L * itemsize), sm))
    tb = max(sm, min(128, cap, bp0))
    # Prefer >= 4 grid steps (double-buffer overlap + megacore sharding on
    # v7x) as long as the tile keeps >= 32 rows so the per-step DMA still
    # amortizes the ~0.35us grid overhead.
    floor_tb = max(32, sm) if bp0 >= max(32, sm) else sm
    while tb > floor_tb and bp0 // tb < 4:
        tb = max(floor_tb, _round_down(max(tb // 2, sm), sm))
    return tb


def _attn_pool_kernel(x_ref, mask_ref, w_ref, pooled_ref, attn_ref):
    # x_ref:      (TB, D, L)  storage dtype (no f32 HBM copy)
    # mask_ref:   (TB, 1, L)  int8, nonzero == masked-out
    # w_ref:      (1, 1, D)   linear weight
    # pooled_ref: (TB, D)     lane-dense output slab
    # attn_ref:   (TB, L)     lane-dense output slab
    tb, d, l = x_ref.shape

    x = x_ref[...]                                                 # (TB, D, L)
    w = jnp.broadcast_to(w_ref[...], (tb, 1, d)).astype(x.dtype)   # (TB, 1, D)

    # logits[b, 0, l] = sum_d w[d] * x[b, d, l]
    # Batched MXU matvec with f32 accumulation; LHS contracts on lanes, RHS on
    # sublanes (both canonical), so no x transpose is generated.
    logits = jnp.einsum("bod,bdl->bol", w, x,
                        preferred_element_type=jnp.float32)        # (TB, 1, L)
    # NOTE: Linear bias intentionally dropped — softmax is shift-invariant, so
    # adding a scalar to every logit cannot change attn or pooled.

    # masked_fill(mask, -inf); direct int8 compare (no i8->i32 unpack).
    logits = jnp.where(mask_ref[...] != 0, -jnp.inf, logits)

    # softmax over L (== dim=1 of the PyTorch (B, L, 1) logits)
    mx = jnp.max(logits, axis=-1, keepdims=True)                   # (TB, 1, 1)
    e = jnp.exp(logits - mx)
    s = jnp.sum(e, axis=-1, keepdims=True)                         # (TB, 1, 1)
    attn = e * pl.reciprocal(s, approx=False)                      # (TB, 1, L)

    # pooled[b, d] = sum_l attn[b, 0, l] * x[b, d, l]
    # VPU multiply (attn sublane-broadcast over D) + lane reduction: avoids a
    # batched dot whose lowering could emit per-batch (D,L)->(L,D) XLU
    # transposes; the cost here is fully hidden under the x DMA stream.
    pooled = jnp.sum(x.astype(jnp.float32) * attn, axis=-1)        # (TB, D)

    attn_ref[...] = attn.reshape(tb, l).astype(attn_ref.dtype)
    pooled_ref[...] = pooled.astype(pooled_ref.dtype)


def attention_pooling(x, mask, weight, bias=None, *, block_b=None):
    """AttentionPooling forward.

    x: (B, D, L) float, mask: (B, L) bool (True = masked-out), weight: (D,),
    bias: scalar (accepted for API parity; a scalar bias is a softmax no-op
    and is therefore not used).  Returns (pooled (B, D), attn (B, L, 1)).
    Fully-masked rows produce NaN, matching PyTorch softmax of all -inf.
    """
    del bias  # softmax shift-invariance: the Linear bias cannot affect outputs
    B, D, L = x.shape
    out_dtype = x.dtype
    itemsize = jnp.dtype(x.dtype).itemsize
    out_itemsize = jnp.dtype(out_dtype).itemsize
    sm = _sublane_multiple(x.dtype)

    if block_b is None:
        block_b = _choose_block_b(B, D, L, x.dtype)
    block_b = max(sm, _round_up(int(block_b), sm))   # dtype-aware sublane tile

    # int8 mask (no f32 mask round-trip through HBM), broadcast dim for D.
    mask_i8 = mask.astype(jnp.int8).reshape(B, 1, L)

    # Pad the batch so the grid tiles it exactly.  Padded rows are left
    # unmasked (all-zero mask) so their softmax stays finite; sliced off below.
    Bp = _round_up(B, block_b)
    if Bp != B:
        pad = Bp - B
        x = jnp.pad(x, ((0, pad), (0, 0), (0, 0)))
        mask_i8 = jnp.pad(mask_i8, ((0, pad), (0, 0), (0, 0)))

    w3 = weight.reshape(1, 1, D).astype(x.dtype)

    # VMEM limit scaled to the double-buffered tile footprint (+ headroom),
    # capped under v7x's 64 MiB physical VMEM.
    need = 2 * (block_b * D * L * itemsize           # x
                + block_b * L                         # int8 mask
                + D * itemsize                        # weight
                + block_b * D * out_itemsize          # pooled
                + block_b * L * out_itemsize)         # attn
    vmem_limit = int(min(56 * 1024 * 1024,
                         max(16 * 1024 * 1024, need + 8 * 1024 * 1024)))

    grid = (Bp // block_b,)
    pooled, attn = pl.pallas_call(
        _attn_pool_kernel,
        grid=grid,
        in_specs=[
            pl.BlockSpec((block_b, D, L), lambda i: (i, 0, 0)),    # x
            pl.BlockSpec((block_b, 1, L), lambda i: (i, 0, 0)),    # mask int8
            pl.BlockSpec((1, 1, D), lambda i: (0, 0, 0)),          # weight
        ],
        out_specs=[
            pl.BlockSpec((block_b, D), lambda i: (i, 0)),          # pooled
            pl.BlockSpec((block_b, L), lambda i: (i, 0)),          # attn
        ],
        out_shape=[
            jax.ShapeDtypeStruct((Bp, D), out_dtype),
            jax.ShapeDtypeStruct((Bp, L), out_dtype),
        ],
        compiler_params=pltpu.CompilerParams(
            dimension_semantics=("parallel",),
            vmem_limit_bytes=vmem_limit,
        ),
    )(x, mask_i8, w3)

    pooled = pooled[:B]
    attn = attn[:B]
    # Match PyTorch output shapes: pooled (B, D), attn (B, L, 1)
    return pooled, attn.reshape(B, L, 1)


def attention_pooling_ref(x, mask, weight, bias):
    """Pure-JAX reference mirroring the PyTorch forward."""
    logits = jnp.einsum("bdl,d->bl", x, weight) + bias             # (B, L)
    logits = jnp.where(mask, -jnp.inf, logits)
    attn = jax.nn.softmax(logits, axis=-1)[..., None]              # (B, L, 1)
    pooled = jnp.einsum("bdl,blo->bd", x, attn)                    # (B, D)
    return pooled, attn


if __name__ == "__main__":
    key = jax.random.PRNGKey(0)
    k_x, k_w, k_b, k_m = jax.random.split(key, 4)

    B, D, L = 16, 128, 128  # batch, embed_dim, seq_len
    x = jax.random.normal(k_x, (B, D, L), dtype=jnp.float32)

    # Deterministic PyTorch-Linear-style init: U(-1/sqrt(D), 1/sqrt(D))
    bound = 1.0 / np.sqrt(D)
    weight = jax.random.uniform(k_w, (D,), minval=-bound, maxval=bound,
                                dtype=jnp.float32)
    bias = jax.random.uniform(k_b, (1,), minval=-bound, maxval=bound,
                              dtype=jnp.float32)[0]

    # Padding-style mask: True = masked; keep at least one valid position/row
    # (a fully-masked row gives NaN, matching PyTorch softmax of all -inf).
    mask = jax.random.uniform(k_m, (B, L)) < 0.3
    mask = mask.at[:, 0].set(False)

    # 1) Auto-tiled run (dtype/VMEM-aware block_b).
    pooled, attn = attention_pooling(x, mask, weight, bias)
    pooled = jax.block_until_ready(pooled)
    attn = jax.block_until_ready(attn)

    pooled_ref, attn_ref = attention_pooling_ref(x, mask, weight, bias)
    np.testing.assert_allclose(np.asarray(pooled), np.asarray(pooled_ref),
                               rtol=1e-5, atol=1e-5)
    np.testing.assert_allclose(np.asarray(attn), np.asarray(attn_ref),
                               rtol=1e-5, atol=1e-5)

    # 2) Forced small tile on an odd batch: exercises grid > 1 and batch
    #    padding (padded rows sliced off before returning).
    B2 = 20
    x2 = x[:B2] if B2 <= B else jnp.pad(x, ((0, B2 - B), (0, 0), (0, 0)))
    mask2 = mask[:B2] if B2 <= B else jnp.pad(mask, ((0, B2 - B), (0, 0)))
    pooled2, attn2 = attention_pooling(x2, mask2, weight, bias, block_b=8)
    pooled2 = jax.block_until_ready(pooled2)
    attn2 = jax.block_until_ready(attn2)
    pooled2_ref, attn2_ref = attention_pooling_ref(x2, mask2, weight, bias)
    np.testing.assert_allclose(np.asarray(pooled2), np.asarray(pooled2_ref),
                               rtol=1e-5, atol=1e-5)
    np.testing.assert_allclose(np.asarray(attn2), np.asarray(attn2_ref),
                               rtol=1e-5, atol=1e-5)

    print("KERNEL_OK")
</pallas_src>

<mosaic_0001>
module attributes {stable_mosaic.version = 11 : i64} {
  func.func @_attn_pool_kernel(%arg0: i32, %arg1: memref<8x128x128xf32, #tpu.memory_space<vmem>>, %arg2: memref<8x1x128xi8, #tpu.memory_space<vmem>>, %arg3: memref<1x1x128xf32, #tpu.memory_space<vmem>>, %arg4: memref<8x128xf32, #tpu.memory_space<vmem>>, %arg5: memref<8x128xf32, #tpu.memory_space<vmem>>) attributes {dimension_semantics = [#tpu.dimension_semantics<parallel>], iteration_bounds = array<i64: 2>, scalar_prefetch = 0 : i64, scratch_operands = 0 : i64, tpu.core_type = #tpu.core_type<tc>, window_params = [{transform_indices = @transform_0, window_bounds = array<i64: 8, 128, 128>}, {transform_indices = @transform_1, window_bounds = array<i64: 8, 1, 128>}, {pipeline_mode = #tpu.pipeline_mode<synchronous>, transform_indices = @transform_2, window_bounds = array<i64: 1, 1, 128>}, {transform_indices = @transform_3, window_bounds = array<i64: 8, 128>}, {transform_indices = @transform_4, window_bounds = array<i64: 8, 128>}]} {
    %c0 = arith.constant 0 : index
    %c0_0 = arith.constant 0 : index
    %c0_1 = arith.constant 0 : index
    %0 = vector.load %arg1[%c0, %c0_0, %c0_1] : memref<8x128x128xf32, #tpu.memory_space<vmem>>, vector<8x128x128xf32>
    %c0_2 = arith.constant 0 : index
    %c0_3 = arith.constant 0 : index
    %c0_4 = arith.constant 0 : index
    %1 = vector.load %arg3[%c0_2, %c0_3, %c0_4] : memref<1x1x128xf32, #tpu.memory_space<vmem>>, vector<1x1x128xf32>
    %2 = vector.shape_cast %1 : vector<1x1x128xf32> to vector<1x1x128xf32>
    %3 = vector.broadcast %2 : vector<1x1x128xf32> to vector<8x1x128xf32>
    "tpu.trace_start"() <{level = 10 : i32, message = "bod,bdl->bol"}> : () -> ()
    %cst = arith.constant dense<0.000000e+00> : vector<8x1x128xf32>
    %4 = tpu.matmul %3, %0, %cst {dimension_numbers = #tpu.dot_dimension_numbers<[2], [1], [1], [2], [0, 0, 0, 1, 1, 2], [0], [0]>} : vector<8x1x128xf32>, vector<8x128x128xf32>, vector<8x1x128xf32> -> vector<8x1x128xf32>
    "tpu.trace_stop"() : () -> ()
    %c0_5 = arith.constant 0 : index
    %c0_6 = arith.constant 0 : index
    %c0_7 = arith.constant 0 : index
    %5 = vector.load %arg2[%c0_5, %c0_6, %c0_7] : memref<8x1x128xi8, #tpu.memory_space<vmem>>, vector<8x1x128xi8>
    %c0_i8 = arith.constant 0 : i8
    %6 = vector.broadcast %c0_i8 : i8 to vector<8x1x128xi8>
    %7 = arith.cmpi ne, %5, %6 : vector<8x1x128xi8>
    %cst_8 = arith.constant 0xFF800000 : f32
    %8 = vector.broadcast %cst_8 : f32 to vector<8x1x128xf32>
    %9 = arith.select %7, %8, %4 : vector<8x1x128xi1>, vector<8x1x128xf32>
    %cst_9 = arith.constant dense<0xFF800000> : vector<8x1xf32>
    %10 = vector.multi_reduction <maximumf>, %9, %cst_9 [2] : vector<8x1x128xf32> to vector<8x1xf32>
    %11 = vector.shape_cast %10 : vector<8x1xf32> to vector<8x1x1xf32>
    %12 = vector.broadcast %11 : vector<8x1x1xf32> to vector<8x1x128xf32>
    %13 = arith.subf %9, %12 : vector<8x1x128xf32>
    %14 = math.exp %13 : vector<8x1x128xf32>
    %cst_10 = arith.constant dense<0.000000e+00> : vector<8x1xf32>
    %15 = vector.multi_reduction <add>, %14, %cst_10 [2] : vector<8x1x128xf32> to vector<8x1xf32>
    %16 = vector.shape_cast %15 : vector<8x1xf32> to vector<8x1x1xf32>
    %17 = tpu.reciprocal %16 : vector<8x1x1xf32> -> vector<8x1x1xf32>
    %18 = vector.broadcast %17 : vector<8x1x1xf32> to vector<8x1x128xf32>
    %19 = arith.mulf %14, %18 : vector<8x1x128xf32>
    %20 = vector.broadcast %19 : vector<8x1x128xf32> to vector<8x128x128xf32>
    %21 = arith.mulf %0, %20 : vector<8x128x128xf32>
    %cst_11 = arith.constant dense<0.000000e+00> : vector<8x128xf32>
    %22 = vector.multi_reduction <add>, %21, %cst_11 [2] : vector<8x128x128xf32> to vector<8x128xf32>
    %23 = vector.shape_cast %19 : vector<8x1x128xf32> to vector<8x128xf32>
    %c0_12 = arith.constant 0 : index
    %c0_13 = arith.constant 0 : index
    %24 = vector.load %arg5[%c0_12, %c0_13] : memref<8x128xf32, #tpu.memory_space<vmem>>, vector<8x128xf32>
    tpu.vector_store %arg5[%c0_12, %c0_13], %23 {strides = array<i32>} : memref<8x128xf32, #tpu.memory_space<vmem>>, vector<8x128xf32>,
    %c0_14 = arith.constant 0 : index
    %c0_15 = arith.constant 0 : index
    %25 = vector.load %arg4[%c0_14, %c0_15] : memref<8x128xf32, #tpu.memory_space<vmem>>, vector<8x128xf32>
    tpu.vector_store %arg4[%c0_14, %c0_15], %22 {strides = array<i32>} : memref<8x128xf32, #tpu.memory_space<vmem>>, vector<8x128xf32>,
    return
  }
  func.func @transform_0(%arg0: i32) -> (i32, i32, i32) {
    %c0_i32 = arith.constant 0 : i32
    %c0_i32_0 = arith.constant 0 : i32
    %c0_i32_1 = arith.constant 0 : i32
    return %arg0, %c0_i32, %c0_i32_0 : i32, i32, i32
  }
  func.func @transform_1(%arg0: i32) -> (i32, i32, i32) {
    %c0_i32 = arith.constant 0 : i32
    %c0_i32_0 = arith.constant 0 : i32
    %c0_i32_1 = arith.constant 0 : i32
    return %arg0, %c0_i32, %c0_i32_0 : i32, i32, i32
  }
  func.func @transform_2(%arg0: i32) -> (i32, i32, i32) {
    %c0_i32 = arith.constant 0 : i32
    %c0_i32_0 = arith.constant 0 : i32
    %c0_i32_1 = arith.constant 0 : i32
    %c0_i32_2 = arith.constant 0 : i32
    return %c0_i32, %c0_i32_0, %c0_i32_1 : i32, i32, i32
  }
  func.func @transform_3(%arg0: i32) -> (i32, i32) {
    %c0_i32 = arith.constant 0 : i32
    %c0_i32_0 = arith.constant 0 : i32
    return %arg0, %c0_i32 : i32, i32
  }
  func.func @transform_4(%arg0: i32) -> (i32, i32) {
    %c0_i32 = arith.constant 0 : i32
    %c0_i32_0 = arith.constant 0 : i32
    return %arg0, %c0_i32 : i32, i32
  }
}

</mosaic_0001>

<llo_original>
// kernel: tpu_custom_call.1
$region0: #{tpu_custom_call.1}
  #allocation0 [shape = 'u32[]', space=smem, size = 0x4, offset = 0x4, fixed_abs, tag = 'smem constant byte address 0x4 - core index']
  #allocation1 [shape = 'u32[72,128]{1,0:T(1,128)}', space=vmem, size = 0x9000, scoped, tag = 'internal scratch']
  %s0 = inlined_call_operand.hbm [shape: f32[16,128,128], index: 0, kind: input, shape index: {}]
  %s1 = inlined_call_operand.vmem [shape: s8[16,1,128], index: 1, kind: input, shape index: {}]
  %s2 = inlined_call_operand.vmem [shape: f32[1,1,128], index: 2, kind: input, shape index: {}]
  %s3 = inlined_call_operand.hbm [shape: f32[16,128], index: 3, kind: output, shape index: {0}]
  %s4 = inlined_call_operand.hbm [shape: f32[16,128], index: 4, kind: output, shape index: {1}]
  %5 = xla_tuple %s3, %s4
  %s6 = sld [smem:[#allocation0]]
  $region57: #{tpu_custom_call.1} parent=0
    _
  %s8 = ssub.s32 1, %s6
  %s9 = scalar_select 0, %s8, %s6
  $region1: #{tpu_custom_call.1} parent=0
    #allocation2 [shape = 'u8[1048576]{0}', space=vmem, size = 0x100000, scoped, tag = 'input window, operand 0']
    #allocation3 [shape = 's32[2]{0}', space=sflag, size = 0x8, scoped, tag = 'scoped memory for tpu_custom_call.1']
    #allocation4 [shape = 's32[2]{0}', space=sflag, size = 0x8, scoped, tag = 'scoped memory for tpu_custom_call.1']
    #allocation5 [shape = 'u8[8192]{0}', space=vmem, size = 0x2000, scoped, tag = 'output window, operand 0']
    #allocation6 [shape = 'u8[8192]{0}', space=vmem, size = 0x2000, scoped, tag = 'output window, operand 1']
    #allocation7 [shape = 's32[2]{0}', space=sflag, size = 0x8, scoped, tag = 'scoped memory for tpu_custom_call.1']
    %10 = vsyncpa [#allocation3], 0
    %s11 = scalar_lea.sflag [#allocation3], 1
    %12 = vsyncpa %s11, 0
    %13 = vsyncpa [#allocation4], 0
    %s14 = scalar_lea.sflag [#allocation4], 1
    %15 = vsyncpa %s14, 0
    %16 = vsyncpa [#allocation7], 0
    %s17 = scalar_lea.sflag [#allocation7], 1
    %18 = vsyncpa %s17, 0
    loop: start=0, step=1, limit=4
    $region2: #{tpu_custom_call.1} parent=1 // loop_pre_header
      _
    $region3: #{tpu_custom_call.1} parent=1 // loop_header
      %s20 = sphi 0, %s24
      %p21 = scmp.ge.s32.totalorder %s20, 4
      %s30 = sphi 0, %s32
      %s33 = sphi 0, %s30
      %s34 = sphi 0, %s33
      %s50 = sphi 0, %s34
      %s56 = sphi 0, %s58
      %s59 = sphi 0, %s56
      %s60 = sphi 0, %s59
      %s76 = sphi 0, %s60
      %s80 = sphi 0, %s80
      %s82 = sphi 0, %s80
      %s83 = sphi 0, %s82
      %s97 = sphi 0, %s83
      %s103 = sphi 0, %s105
      %s106 = sphi 0, %s103
      %s107 = sphi 0, %s106
      %s123 = sphi 0, %s107
      %s129 = sphi 0, %s131
      %s132 = sphi 0, %s129
      %s133 = sphi 0, %s132
      %s149 = sphi 0, %s133
    $region4: #{tpu_custom_call.1} parent=1 // loop_header_branch
      %23 = sbr.rel (%p21) target = $region8
    $region5: #{tpu_custom_call.1} parent=1 // loop_body
      %s25 = ssub.s32 %s20, 1
      %s26 = ssub.s32 %s20, 2
      %s27 = sadd.s32 %s20, 1
      %s28 = ssub.s32 %s20, %s27
      %p29 = scmp.eq.s32.totalorder %s28, 0
      %s31 = sadd.s32 %s30, 1
      %s32 = scalar_select %p29, %s30, %s31
      %p35 = pneg %p29
      %p36 = scmp.eq.s32.totalorder %s20, 1
      %p37 = por %p35, %p36
      %p38 = scmp.ne.s32.totalorder %s30, %s33
      %p39 = scmp.eq.s32.totalorder %s20, 0
      %p40 = por %p38, %p39
      %p41 = scmp.ne.s32.totalorder %s30, %s33
      %p42 = scmp.eq.s32.totalorder %s25, 1
      %p43 = por %p41, %p42
      %p44 = scmp.ne.s32.totalorder %s33, %s34
      %p45 = scmp.eq.s32.totalorder %s25, 0
      %p46 = por %p44, %p45
      %p47 = scmp.ne.s32.totalorder %s33, %s34
      %p48 = scmp.eq.s32.totalorder %s26, 1
      %p49 = por %p47, %p48
      %p51 = scmp.ne.s32.totalorder %s34, %s50
      %p52 = scmp.eq.s32.totalorder %s26, 0
      %p53 = por %p51, %p52
      %s54 = ssub.s32 %s20, %s27
      %p55 = scmp.eq.s32.totalorder %s54, 0
      %s57 = sadd.s32 %s56, 1
      %s58 = scalar_select %p55, %s56, %s57
      %p61 = pneg %p55
      %p62 = scmp.eq.s32.totalorder %s20, 1
      %p63 = por %p61, %p62
      %p64 = scmp.ne.s32.totalorder %s56, %s59
      %p65 = scmp.eq.s32.totalorder %s20, 0
      %p66 = por %p64, %p65
      %p67 = scmp.ne.s32.totalorder %s56, %s59
      %p68 = scmp.eq.s32.totalorder %s25, 1
      %p69 = por %p67, %p68
      %p70 = scmp.ne.s32.totalorder %s59, %s60
      %p71 = scmp.eq.s32.totalorder %s25, 0
      %p72 = por %p70, %p71
      %p73 = scmp.ne.s32.totalorder %s59, %s60
      %p74 = scmp.eq.s32.totalorder %s26, 1
      %p75 = por %p73, %p74
      %p77 = scmp.ne.s32.totalorder %s60, %s76
      %p78 = scmp.eq.s32.totalorder %s26, 0
      %p79 = por %p77, %p78
      %s81 = sadd.s32 %s80, 1
      %p84 = scmp.eq.s32.totalorder %s20, 1
      %p85 = scmp.ne.s32.totalorder %s80, %s82
      %p86 = scmp.eq.s32.totalorder %s20, 0
      %p87 = por %p85, %p86
      %p88 = scmp.ne.s32.totalorder %s80, %s82
      %p89 = scmp.eq.s32.totalorder %s25, 1
      %p90 = por %p88, %p89
      %p91 = scmp.ne.s32.totalorder %s82, %s83
      %p92 = scmp.eq.s32.totalorder %s25, 0
      %p93 = por %p91, %p92
      %p94 = scmp.ne.s32.totalorder %s82, %s83
      %p95 = scmp.eq.s32.totalorder %s26, 1
      %p96 = por %p94, %p95
      %p98 = scmp.ne.s32.totalorder %s83, %s97
      %p99 = scmp.eq.s32.totalorder %s26, 0
      %p100 = por %p98, %p99
      %s101 = ssub.s32 %s20, %s27
      %p102 = scmp.eq.s32.totalorder %s101, 0
      %s104 = sadd.s32 %s103, 1
      %s105 = scalar_select %p102, %s103, %s104
      %p108 = pneg %p102
      %p109 = scmp.eq.s32.totalorder %s20, 1
      %p110 = por %p108, %p109
      %p111 = scmp.ne.s32.totalorder %s103, %s106
      %p112 = scmp.eq.s32.totalorder %s20, 0
      %p113 = por %p111, %p112
      %p114 = scmp.ne.s32.totalorder %s103, %s106
      %p115 = scmp.eq.s32.totalorder %s25, 1
      %p116 = por %p114, %p115
      %p117 = scmp.ne.s32.totalorder %s106, %s107
      %p118 = scmp.eq.s32.totalorder %s25, 0
      %p119 = por %p117, %p118
      %p120 = scmp.ne.s32.totalorder %s106, %s107
      %p121 = scmp.eq.s32.totalorder %s26, 1
      %p122 = por %p120, %p121
      %p124 = scmp.ne.s32.totalorder %s107, %s123
      %p125 = scmp.eq.s32.totalorder %s26, 0
      %p126 = por %p124, %p125
      %s127 = ssub.s32 %s20, %s27
      %p128 = scmp.eq.s32.totalorder %s127, 0
      %s130 = sadd.s32 %s129, 1
      %s131 = scalar_select %p128, %s129, %s130
      %p134 = pneg %p128
      %p135 = scmp.eq.s32.totalorder %s20, 1
      %p136 = por %p134, %p135
      %p137 = scmp.ne.s32.totalorder %s129, %s132
      %p138 = scmp.eq.s32.totalorder %s20, 0
      %p139 = por %p137, %p138
      %p140 = scmp.ne.s32.totalorder %s129, %s132
      %p141 = scmp.eq.s32.totalorder %s25, 1
      %p142 = por %p140, %p141
      %p143 = scmp.ne.s32.totalorder %s132, %s133
      %p144 = scmp.eq.s32.totalorder %s25, 0
      %p145 = por %p143, %p144
      %p146 = scmp.ne.s32.totalorder %s132, %s133
      %p147 = scmp.eq.s32.totalorder %s26, 1
      %p148 = por %p146, %p147
      %p150 = scmp.ne.s32.totalorder %s133, %s149
      %p151 = scmp.eq.s32.totalorder %s26, 0
      %p152 = por %p150, %p151
      %p153 = scmp.le.s32.totalorder 1, %s20
      %p154 = scmp.lt.s32.totalorder %s20, 3
      %p155 = pnand %p153, %p154
      %p156 = pneg %p155
      // Predicated region
      $region9: #{tpu_custom_call.1} parent=5 // pred_check
        _
      $region10: #{tpu_custom_call.1} parent=5 // pred_check_branch
        %158 = sbr.rel (%p155) target = $region12
      $region11: #{tpu_custom_call.1} parent=5 // pred_region
        %s159 = ssub.s32 %s20, 1
        // Predicated region
        $region13: #{tpu_custom_call.1} parent=11 // pred_check
          %p160 = pneg %p93
        $region14: #{tpu_custom_call.1} parent=11 // pred_check_branch
          %162 = sbr.rel (%p160) target = $region16
        $region15: #{tpu_custom_call.1} parent=11 // pred_region
          _
        $region16: #{tpu_custom_call.1} parent=11 // pred_fallthru
          _
      $region12: #{tpu_custom_call.1} parent=5 // pred_fallthru
        _
      %p163 = scmp.lt.s32.totalorder %s20, 2
      // Predicated region
      $region17: #{tpu_custom_call.1} parent=5 // pred_check
        %p164 = pneg %p163
      $region18: #{tpu_custom_call.1} parent=5 // pred_check_branch
        %166 = sbr.rel (%p164) target = $region20
      $region19: #{tpu_custom_call.1} parent=5 // pred_region
        // Predicated region
        $region21: #{tpu_custom_call.1} parent=19 // pred_check
          %p167 = pneg %p40
        $region22: #{tpu_custom_call.1} parent=19 // pred_check_branch
          %169 = sbr.rel (%p167) target = $region24
        $region23: #{tpu_custom_call.1} parent=19 // pred_region
          %s170 = sand.u32 %s30, 1
          %s171 = scalar_lea.sflag [#allocation3], %s170
          %s172 = sand.u32 %s30, 1
          %s173 = smul.addr %s172, 1024
          %s174 = scalar_lea.vmem [#allocation2], %s173
          %s175 = smul.u32 8, %s20
          %177 = vsyncadd %s171, 0
          %s178 = smul.addr %s175, 16
          %s179 = smul.addr %s178, 8
          %s180 = scalar_lea.hbm %s0, %s179
          %s181 = sshll.u32 %s180, 4
          %s182 = int_to_ptr.hbm [resolvable:$true] %s181
          %s183 = sshll.u32 %s174, 4
          %s184 = int_to_ptr.vmem [resolvable:$true] %s183
          %189 = dma.hbm_to_vmem [thread:$0]  %s182, 16384, %s184, %s171, 128, 128, 8
        $region24: #{tpu_custom_call.1} parent=19 // pred_fallthru
          _
        // Predicated region
        $region25: #{tpu_custom_call.1} parent=19 // pred_check
          %p190 = pneg %p66
        $region26: #{tpu_custom_call.1} parent=19 // pred_check_branch
          %192 = sbr.rel (%p190) target = $region28
        $region27: #{tpu_custom_call.1} parent=19 // pred_region
          %s193 = smul.u32 8, %s20
          %p194 = scmp.lt.s32.totalorder %s193, 15
          %s195 = scalar_select %p194, %s193, 15
          %s196 = scalar_lea.vmem %s1, %s195
          %s197 = smul.u32 8, %s20
        $region28: #{tpu_custom_call.1} parent=19 // pred_fallthru
          _
      $region20: #{tpu_custom_call.1} parent=5 // pred_fallthru
        _
      %p198 = scmp.le.s32.totalorder 1, %s20
      %p199 = scmp.lt.s32.totalorder %s20, 3
      %p200 = pnand %p198, %p199
      %p201 = pneg %p200
      // Predicated region
      $region29: #{tpu_custom_call.1} parent=5 // pred_check
        _
      $region30: #{tpu_custom_call.1} parent=5 // pred_check_branch
        %203 = sbr.rel (%p200) target = $region32
      $region31: #{tpu_custom_call.1} parent=5 // pred_region
        %s204 = ssub.s32 %s20, 1
        %s205 = sand.u32 %s33, 1
        %s206 = scalar_lea.sflag [#allocation3], %s205
        %s207 = sand.u32 %s33, 1
        %s208 = smul.addr %s207, 1024
        %s209 = scalar_lea.vmem [#allocation2], %s208
        // Predicated region
        $region33: #{tpu_custom_call.1} parent=31 // pred_check
          %p210 = pneg %p46
        $region34: #{tpu_custom_call.1} parent=31 // pred_check_branch
          %212 = sbr.rel (%p210) target = $region36
        $region35: #{tpu_custom_call.1} parent=31 // pred_region
          %214 = dma.done %s206, 16384
        $region36: #{tpu_custom_call.1} parent=31 // pred_fallthru
          _
        %s215 = sand.u32 %s33, 1
        %s216 = scalar_lea.sflag [#allocation3], %s215
        %s217 = sand.u32 %s33, 1
        %s218 = smul.addr %s217, 1024
        %s219 = scalar_lea.vmem [#allocation2], %s218
        %p220 = pneg %p46
        %p221 = pneg %p43
        %s222 = smul.u32 8, %s25
        %p223 = scmp.lt.s32.totalorder %s222, 15
        %s224 = scalar_select %p223, %s222, 15
        %s225 = scalar_lea.vmem %s1, %s224
        %p226 = pneg %p72
        %p227 = pneg %p69
        %p228 = pneg %p93
        %p229 = pneg %p90
        %p230 = pneg %p119
        %p231 = pneg %p116
        %s232 = sand.u32 %s106, 1
        %s233 = scalar_lea.sflag [#allocation4], %s232
        %s234 = sand.u32 %s106, 1
        %s235 = smul.addr %s234, 8
        %s236 = scalar_lea.vmem [#allocation5], %s235
        %p237 = pneg %p145
        %p238 = pneg %p142
        %s239 = sand.u32 %s132, 1
        %s240 = scalar_lea.sflag [#allocation7], %s239
        %s241 = sand.u32 %s132, 1
        %s242 = smul.addr %s241, 8
        %s243 = scalar_lea.vmem [#allocation6], %s242
        %s244 = smul.u32 8, %s25
        %s245 = smul.u32 8, %s25
        %p246 = scmp.lt.s32.totalorder %s245, 15
        %s247 = scalar_select %p246, %s245, 15
        %s248 = scalar_lea.vmem %s1, %s247
        %s249 = smul.u32 8, %s25
        %v252 = vld [vmem:[%s209] sm:$0xff]
        %v253 = vld [vmem:[%s209 + $0x8] sm:$0xff]
        %v254 = vld [vmem:[%s209 + $0x10] sm:$0xff]
        %v255 = vld [vmem:[%s209 + $0x18] sm:$0xff]
        %v256 = vld [vmem:[%s209 + $0x20] sm:$0xff]
        %v257 = vld [vmem:[%s209 + $0x28] sm:$0xff]
        %v258 = vld [vmem:[%s209 + $0x30] sm:$0xff]
        %v259 = vld [vmem:[%s209 + $0x38] sm:$0xff]
        %v260 = vld [vmem:[%s209 + $0x40] sm:$0xff]
        %v261 = vld [vmem:[%s209 + $0x48] sm:$0xff]
        %v262 = vld [vmem:[%s209 + $0x50] sm:$0xff]
        %v263 = vld [vmem:[%s209 + $0x58] sm:$0xff]
        %v264 = vld [vmem:[%s209 + $0x60] sm:$0xff]
        %v265 = vld [vmem:[%s209 + $0x68] sm:$0xff]
        %v266 = vld [vmem:[%s209 + $0x70] sm:$0xff]
        %v267 = vld [vmem:[%s209 + $0x78] sm:$0xff]
        %v268 = vld [vmem:[%s209 + $0x80] sm:$0xff]
        %v269 = vld [vmem:[%s209 + $0x88] sm:$0xff]
        %v270 = vld [vmem:[%s209 + $0x90] sm:$0xff]
        %v271 = vld [vmem:[%s209 + $0x98] sm:$0xff]
        %v272 = vld [vmem:[%s209 + $0xa0] sm:$0xff]
        %v273 = vld [vmem:[%s209 + $0xa8] sm:$0xff]
        %v274 = vld [vmem:[%s209 + $0xb0] sm:$0xff]
        %v275 = vld [vmem:[%s209 + $0xb8] sm:$0xff]
        %v276 = vld [vmem:[%s209 + $0xc0] sm:$0xff]
        %v277 = vld [vmem:[%s209 + $0xc8] sm:$0xff]
        %v278 = vld [vmem:[%s209 + $0xd0] sm:$0xff]
        %v279 = vld [vmem:[%s209 + $0xd8] sm:$0xff]
        %v280 = vld [vmem:[%s209 + $0xe0] sm:$0xff]
        %v281 = vld [vmem:[%s209 + $0xe8] sm:$0xff]
        %v282 = vld [vmem:[%s209 + $0xf0] sm:$0xff]
        %v283 = vld [vmem:[%s209 + $0xf8] sm:$0xff]
        %v284 = vld [vmem:[%s209 + $0x100] sm:$0xff]
        %v285 = vld [vmem:[%s209 + $0x108] sm:$0xff]
        %v286 = vld [vmem:[%s209 + $0x110] sm:$0xff]
        %v287 = vld [vmem:[%s209 + $0x118] sm:$0xff]
        %v288 = vld [vmem:[%s209 + $0x120] sm:$0xff]
        %v289 = vld [vmem:[%s209 + $0x128] sm:$0xff]
        %v290 = vld [vmem:[%s209 + $0x130] sm:$0xff]
        %v291 = vld [vmem:[%s209 + $0x138] sm:$0xff]
        %v292 = vld [vmem:[%s209 + $0x140] sm:$0xff]
        %v293 = vld [vmem:[%s209 + $0x148] sm:$0xff]
        %v294 = vld [vmem:[%s209 + $0x150] sm:$0xff]
        %v295 = vld [vmem:[%s209 + $0x158] sm:$0xff]
        %v296 = vld [vmem:[%s209 + $0x160] sm:$0xff]
        %v297 = vld [vmem:[%s209 + $0x168] sm:$0xff]
        %v298 = vld [vmem:[%s209 + $0x170] sm:$0xff]
        %v299 = vld [vmem:[%s209 + $0x178] sm:$0xff]
        %v300 = vld [vmem:[%s209 + $0x180] sm:$0xff]
        %v301 = vld [vmem:[%s209 + $0x188] sm:$0xff]
        %v302 = vld [vmem:[%s209 + $0x190] sm:$0xff]
        %v303 = vld [vmem:[%s209 + $0x198] sm:$0xff]
        %v304 = vld [vmem:[%s209 + $0x1a0] sm:$0xff]
        %v305 = vld [vmem:[%s209 + $0x1a8] sm:$0xff]
        %v306 = vld [vmem:[%s209 + $0x1b0] sm:$0xff]
        %v307 = vld [vmem:[%s209 + $0x1b8] sm:$0xff]
        %v308 = vld [vmem:[%s209 + $0x1c0] sm:$0xff]
        %v309 = vld [vmem:[%s209 + $0x1c8] sm:$0xff]
        %v310 = vld [vmem:[%s209 + $0x1d0] sm:$0xff]
        %v311 = vld [vmem:[%s209 + $0x1d8] sm:$0xff]
        %v312 = vld [vmem:[%s209 + $0x1e0] sm:$0xff]
        %v313 = vld [vmem:[%s209 + $0x1e8] sm:$0xff]
        %v314 = vld [vmem:[%s209 + $0x1f0] sm:$0xff]
        %v315 = vld [vmem:[%s209 + $0x1f8] sm:$0xff]
        %v316 = vld [vmem:[%s209 + $0x200] sm:$0xff]
        %v317 = vld [vmem:[%s209 + $0x208] sm:$0xff]
        %v318 = vld [vmem:[%s209 + $0x210] sm:$0xff]
        %v319 = vld [vmem:[%s209 + $0x218] sm:$0xff]
        %v320 = vld [vmem:[%s209 + $0x220] sm:$0xff]
        %v321 = vld [vmem:[%s209 + $0x228] sm:$0xff]
        %v322 = vld [vmem:[%s209 + $0x230] sm:$0xff]
        %v323 = vld [vmem:[%s209 + $0x238] sm:$0xff]
        %v324 = vld [vmem:[%s209 + $0x240] sm:$0xff]
        %v325 = vld [vmem:[%s209 + $0x248] sm:$0xff]
        %v326 = vld [vmem:[%s209 + $0x250] sm:$0xff]
        %v327 = vld [vmem:[%s209 + $0x258] sm:$0xff]
        %v328 = vld [vmem:[%s209 + $0x260] sm:$0xff]
        %v329 = vld [vmem:[%s209 + $0x268] sm:$0xff]
        %v330 = vld [vmem:[%s209 + $0x270] sm:$0xff]
        %v331 = vld [vmem:[%s209 + $0x278] sm:$0xff]
        %v332 = vld [vmem:[%s209 + $0x280] sm:$0xff]
        %v333 = vld [vmem:[%s209 + $0x288] sm:$0xff]
        %v334 = vld [vmem:[%s209 + $0x290] sm:$0xff]
        %v335 = vld [vmem:[%s209 + $0x298] sm:$0xff]
        %v336 = vld [vmem:[%s209 + $0x2a0] sm:$0xff]
        %v337 = vld [vmem:[%s209 + $0x2a8] sm:$0xff]
        %v338 = vld [vmem:[%s209 + $0x2b0] sm:$0xff]
        %v339 = vld [vmem:[%s209 + $0x2b8] sm:$0xff]
        %v340 = vld [vmem:[%s209 + $0x2c0] sm:$0xff]
        %v341 = vld [vmem:[%s209 + $0x2c8] sm:$0xff]
        %v342 = vld [vmem:[%s209 + $0x2d0] sm:$0xff]
        %v343 = vld [vmem:[%s209 + $0x2d8] sm:$0xff]
        %v344 = vld [vmem:[%s209 + $0x2e0] sm:$0xff]
        %v345 = vld [vmem:[%s209 + $0x2e8] sm:$0xff]
        %v346 = vld [vmem:[%s209 + $0x2f0] sm:$0xff]
        %v347 = vld [vmem:[%s209 + $0x2f8] sm:$0xff]
        %v348 = vld [vmem:[%s209 + $0x300] sm:$0xff]
        %v349 = vld [vmem:[%s209 + $0x308] sm:$0xff]
        %v350 = vld [vmem:[%s209 + $0x310] sm:$0xff]
        %v351 = vld [vmem:[%s209 + $0x318] sm:$0xff]
        %v352 = vld [vmem:[%s209 + $0x320] sm:$0xff]
        %v353 = vld [vmem:[%s209 + $0x328] sm:$0xff]
        %v354 = vld [vmem:[%s209 + $0x330] sm:$0xff]
        %v355 = vld [vmem:[%s209 + $0x338] sm:$0xff]
        %v356 = vld [vmem:[%s209 + $0x340] sm:$0xff]
        %v357 = vld [vmem:[%s209 + $0x348] sm:$0xff]
        %v358 = vld [vmem:[%s209 + $0x350] sm:$0xff]
        %v359 = vld [vmem:[%s209 + $0x358] sm:$0xff]
        %v360 = vld [vmem:[%s209 + $0x360] sm:$0xff]
        %v361 = vld [vmem:[%s209 + $0x368] sm:$0xff]
        %v362 = vld [vmem:[%s209 + $0x370] sm:$0xff]
        %v363 = vld [vmem:[%s209 + $0x378] sm:$0xff]
        %v364 = vld [vmem:[%s209 + $0x380] sm:$0xff]
        %v365 = vld [vmem:[%s209 + $0x388] sm:$0xff]
        %v366 = vld [vmem:[%s209 + $0x390] sm:$0xff]
        %v367 = vld [vmem:[%s209 + $0x398] sm:$0xff]
        %v368 = vld [vmem:[%s209 + $0x3a0] sm:$0xff]
        %v369 = vld [vmem:[%s209 + $0x3a8] sm:$0xff]
        %v370 = vld [vmem:[%s209 + $0x3b0] sm:$0xff]
        %v371 = vld [vmem:[%s209 + $0x3b8] sm:$0xff]
        %v372 = vld [vmem:[%s209 + $0x3c0] sm:$0xff]
        %v373 = vld [vmem:[%s209 + $0x3c8] sm:$0xff]
        %v374 = vld [vmem:[%s209 + $0x3d0] sm:$0xff]
        %v375 = vld [vmem:[%s209 + $0x3d8] sm:$0xff]
        %v376 = vld [vmem:[%s209 + $0x3e0] sm:$0xff]
        %v377 = vld [vmem:[%s209 + $0x3e8] sm:$0xff]
        %v378 = vld [vmem:[%s209 + $0x3f0] sm:$0xff]
        %v379 = vld [vmem:[%s209 + $0x3f8] sm:$0xff]
        %v380 = vld [vmem:[%s2] sm:$0x1]
        %381 = vmatpush.msra.mxu0 %v267
        %382 = vmatpush.msra.mxu0 %v266
        %383 = vmatpush.msra.mxu0 %v265
        %384 = vmatpush.msra.mxu0 %v264
        %385 = vmatpush.msra.mxu0 %v263
        %386 = vmatpush.msra.mxu0 %v262
        %387 = vmatpush.msra.mxu0 %v261
        %388 = vmatpush.msra.mxu0 %v260
        %389 = vmatpush.msra.mxu0 %v259
        %390 = vmatpush.msra.mxu0 %v258
        %391 = vmatpush.msra.mxu0 %v257
        %392 = vmatpush.msra.mxu0 %v256
        %393 = vmatpush.msra.mxu0 %v255
        %394 = vmatpush.msra.mxu0 %v254
        %395 = vmatpush.msra.mxu0 %v253
        %396 = vmatpush.msra.mxu0 %v252
        %397 = vmatmul.f32.gmra.mxu0 %v380
        %v398 = vpop.f32.mrf.mxu0
        %v399 = vadd.f32 0.0, %v398
        %400 = vdwg.mxu0
        %401 = vmatpush.msra.mxu0 %v283
        %402 = vmatpush.msra.mxu0 %v282
        %403 = vmatpush.msra.mxu0 %v281
        %404 = vmatpush.msra.mxu0 %v280
        %405 = vmatpush.msra.mxu0 %v279
        %406 = vmatpush.msra.mxu0 %v278
        %407 = vmatpush.msra.mxu0 %v277
        %408 = vmatpush.msra.mxu0 %v276
        %409 = vmatpush.msra.mxu0 %v275
        %410 = vmatpush.msra.mxu0 %v274
        %411 = vmatpush.msra.mxu0 %v273
        %412 = vmatpush.msra.mxu0 %v272
        %413 = vmatpush.msra.mxu0 %v271
        %414 = vmatpush.msra.mxu0 %v270
        %415 = vmatpush.msra.mxu0 %v269
        %416 = vmatpush.msra.mxu0 %v268
        %417 = vmatmul.f32.gmra.mxu0 %v380
        %v418 = vpop.f32.mrf.mxu0
        %v419 = vadd.f32 0.0, %v418
        %420 = vdwg.mxu0
        %421 = vmatpush.msra.mxu0 %v299
        %422 = vmatpush.msra.mxu0 %v298
        %423 = vmatpush.msra.mxu0 %v297
        %424 = vmatpush.msra.mxu0 %v296
        %425 = vmatpush.msra.mxu0 %v295
        %426 = vmatpush.msra.mxu0 %v294
        %427 = vmatpush.msra.mxu0 %v293
        %428 = vmatpush.msra.mxu0 %v292
        %429 = vmatpush.msra.mxu0 %v291
        %430 = vmatpush.msra.mxu0 %v290
        %431 = vmatpush.msra.mxu0 %v289
        %432 = vmatpush.msra.mxu0 %v288
        %433 = vmatpush.msra.mxu0 %v287
        %434 = vmatpush.msra.mxu0 %v286
        %435 = vmatpush.msra.mxu0 %v285
        %436 = vmatpush.msra.mxu0 %v284
        %437 = vmatmul.f32.gmra.mxu0 %v380
        %v438 = vpop.f32.mrf.mxu0
        %v439 = vadd.f32 0.0, %v438
        %440 = vdwg.mxu0
        %441 = vmatpush.msra.mxu0 %v315
        %442 = vmatpush.msra.mxu0 %v314
        %443 = vmatpush.msra.mxu0 %v313
        %444 = vmatpush.msra.mxu0 %v312
        %445 = vmatpush.msra.mxu0 %v311
        %446 = vmatpush.msra.mxu0 %v310
        %447 = vmatpush.msra.mxu0 %v309
        %448 = vmatpush.msra.mxu0 %v308
        %449 = vmatpush.msra.mxu0 %v307
        %450 = vmatpush.msra.mxu0 %v306
        %451 = vmatpush.msra.mxu0 %v305
        %452 = vmatpush.msra.mxu0 %v304
        %453 = vmatpush.msra.mxu0 %v303
        %454 = vmatpush.msra.mxu0 %v302
        %455 = vmatpush.msra.mxu0 %v301
        %456 = vmatpush.msra.mxu0 %v300
        %457 = vmatmul.f32.gmra.mxu0 %v380
        %v458 = vpop.f32.mrf.mxu0
        %v459 = vadd.f32 0.0, %v458
        %460 = vdwg.mxu0
        %461 = vmatpush.msra.mxu0 %v331
        %462 = vmatpush.msra.mxu0 %v330
        %463 = vmatpush.msra.mxu0 %v329
        %464 = vmatpush.msra.mxu0 %v328
        %465 = vmatpush.msra.mxu0 %v327
        %466 = vmatpush.msra.mxu0 %v326
        %467 = vmatpush.msra.mxu0 %v325
        %468 = vmatpush.msra.mxu0 %v324
        %469 = vmatpush.msra.mxu0 %v323
        %470 = vmatpush.msra.mxu0 %v322
        %471 = vmatpush.msra.mxu0 %v321
        %472 = vmatpush.msra.mxu0 %v320
        %473 = vmatpush.msra.mxu0 %v319
        %474 = vmatpush.msra.mxu0 %v318
        %475 = vmatpush.msra.mxu0 %v317
        %476 = vmatpush.msra.mxu0 %v316
        %477 = vmatmul.f32.gmra.mxu0 %v380
        %v478 = vpop.f32.mrf.mxu0
        %v479 = vadd.f32 0.0, %v478
        %480 = vdwg.mxu0
        %481 = vmatpush.msra.mxu0 %v347
        %482 = vmatpush.msra.mxu0 %v346
        %483 = vmatpush.msra.mxu0 %v345
        %484 = vmatpush.msra.mxu0 %v344
        %485 = vmatpush.msra.mxu0 %v343
        %486 = vmatpush.msra.mxu0 %v342
        %487 = vmatpush.msra.mxu0 %v341
        %488 = vmatpush.msra.mxu0 %v340
        %489 = vmatpush.msra.mxu0 %v339
        %490 = vmatpush.msra.mxu0 %v338
        %491 = vmatpush.msra.mxu0 %v337
        %492 = vmatpush.msra.mxu0 %v336
        %493 = vmatpush.msra.mxu0 %v335
        %494 = vmatpush.msra.mxu0 %v334
        %495 = vmatpush.msra.mxu0 %v333
        %496 = vmatpush.msra.mxu0 %v332
        %497 = vmatmul.f32.gmra.mxu0 %v380
        %v498 = vpop.f32.mrf.mxu0
        %v499 = vadd.f32 0.0, %v498
        %500 = vdwg.mxu0
        %501 = vmatpush.msra.mxu0 %v363
        %502 = vmatpush.msra.mxu0 %v362
        %503 = vmatpush.msra.mxu0 %v361
        %504 = vmatpush.msra.mxu0 %v360
        %505 = vmatpush.msra.mxu0 %v359
        %506 = vmatpush.msra.mxu0 %v358
        %507 = vmatpush.msra.mxu0 %v357
        %508 = vmatpush.msra.mxu0 %v356
        %509 = vmatpush.msra.mxu0 %v355
        %510 = vmatpush.msra.mxu0 %v354
        %511 = vmatpush.msra.mxu0 %v353
        %512 = vmatpush.msra.mxu0 %v352
        %513 = vmatpush.msra.mxu0 %v351
        %514 = vmatpush.msra.mxu0 %v350
        %515 = vmatpush.msra.mxu0 %v349
        %516 = vmatpush.msra.mxu0 %v348
        %517 = vmatmul.f32.gmra.mxu0 %v380
        %v518 = vpop.f32.mrf.mxu0
        %v519 = vadd.f32 0.0, %v518
        %520 = vdwg.mxu0
        %521 = vmatpush.msra.mxu0 %v379
        %522 = vmatpush.msra.mxu0 %v378
        %523 = vmatpush.msra.mxu0 %v377
        %524 = vmatpush.msra.mxu0 %v376
        %525 = vmatpush.msra.mxu0 %v375
        %526 = vmatpush.msra.mxu0 %v374
        %527 = vmatpush.msra.mxu0 %v373
        %528 = vmatpush.msra.mxu0 %v372
        %529 = vmatpush.msra.mxu0 %v371
        %530 = vmatpush.msra.mxu0 %v370
        %531 = vmatpush.msra.mxu0 %v369
        %532 = vmatpush.msra.mxu0 %v368
        %533 = vmatpush.msra.mxu0 %v367
        %534 = vmatpush.msra.mxu0 %v366
        %535 = vmatpush.msra.mxu0 %v365
        %536 = vmatpush.msra.mxu0 %v364
        %537 = vmatmul.f32.gmra.mxu0 %v380
        %v538 = vpop.f32.mrf.mxu0
        %v539 = vadd.f32 0.0, %v538
        %540 = vdwg.mxu0
        %v541 = vld [vmem:[%s248] sm:$0x1]
        %v542 = vld [vmem:[%s248 + $0x1] sm:$0x1]
        %v543 = vld [vmem:[%s248 + $0x2] sm:$0x1]
        %v544 = vld [vmem:[%s248 + $0x3] sm:$0x1]
        %v545 = vld [vmem:[%s248 + $0x4] sm:$0x1]
        %v546 = vld [vmem:[%s248 + $0x5] sm:$0x1]
        %v547 = vld [vmem:[%s248 + $0x6] sm:$0x1]
        %v548 = vld [vmem:[%s248 + $0x7] sm:$0x1]
        %vm549 = vnez %v541
        %vm550 = vnez %v542
        %vm551 = vnez %v543
        %vm552 = vnez %v544
        %vm553 = vnez %v545
        %vm554 = vnez %v546
        %vm555 = vnez %v547
        %vm556 = vnez %v548
        %v557 = vsel %vm549, 16843009, 0
        %v558 = vsel %vm550, 16843009, 0
        %v559 = vsel %vm551, 16843009, 0
        %v560 = vsel %vm552, 16843009, 0
        %v561 = vsel %vm553, 16843009, 0
        %v562 = vsel %vm554, 16843009, 0
        %v563 = vsel %vm555, 16843009, 0
        %v564 = vsel %vm556, 16843009, 0
        %v565 = vunpack.c.0.s8 %v557
        %v566 = vunpack.c.0.s8 %v558
        %v567 = vunpack.c.0.s8 %v559
        %v568 = vunpack.c.0.s8 %v560
        %v569 = vunpack.c.0.s8 %v561
        %v570 = vunpack.c.0.s8 %v562
        %v571 = vunpack.c.0.s8 %v563
        %v572 = vunpack.c.0.s8 %v564
        %vm573 = vcmp.ne.s32.totalorder %v565, 0
        %vm574 = vcmp.ne.s32.totalorder %v566, 0
        %vm575 = vcmp.ne.s32.totalorder %v567, 0
        %vm576 = vcmp.ne.s32.totalorder %v568, 0
        %vm577 = vcmp.ne.s32.totalorder %v569, 0
        %vm578 = vcmp.ne.s32.totalorder %v570, 0
        %vm579 = vcmp.ne.s32.totalorder %v571, 0
        %vm580 = vcmp.ne.s32.totalorder %v572, 0
        %v581 = vsel %vm573, -inf, %v399
        %v582 = vsel %vm574, -inf, %v419
        %v583 = vsel %vm575, -inf, %v439
        %v584 = vsel %vm576, -inf, %v459
        %v585 = vsel %vm577, -inf, %v479
        %v586 = vsel %vm578, -inf, %v499
        %v587 = vsel %vm579, -inf, %v519
        %v588 = vsel %vm580, -inf, %v539
        %vm589 = vcmask 1040384
        %v590 = vsel %vm589, %v581, -inf
        %591 = vmax.xlane.f32.xlu0 %v590
        %v592 = vpop.xlane.xlu0 %591
        %v593 = vsel %vm589, %v582, -inf
        %594 = vmax.xlane.f32.xlu0 %v593
        %v595 = vpop.xlane.xlu0 %594
        %v596 = vsel %vm589, %v583, -inf
        %597 = vmax.xlane.f32.xlu0 %v596
        %v598 = vpop.xlane.xlu0 %597
        %v599 = vsel %vm589, %v584, -inf
        %600 = vmax.xlane.f32.xlu0 %v599
        %v601 = vpop.xlane.xlu0 %600
        %v602 = vsel %vm589, %v585, -inf
        %603 = vmax.xlane.f32.xlu0 %v602
        %v604 = vpop.xlane.xlu0 %603
        %v605 = vsel %vm589, %v586, -inf
        %606 = vmax.xlane.f32.xlu0 %v605
        %v607 = vpop.xlane.xlu0 %606
        %v608 = vsel %vm589, %v587, -inf
        %609 = vmax.xlane.f32.xlu0 %v608
        %v610 = vpop.xlane.xlu0 %609
        %v611 = vsel %vm589, %v588, -inf
        %612 = vmax.xlane.f32.xlu0 %v611
        %v613 = vpop.xlane.xlu0 %612
        %v614 = vsub.f32 %v581, %v592
        %v615 = vsub.f32 %v582, %v595
        %v616 = vsub.f32 %v583, %v598
        %v617 = vsub.f32 %v584, %v601
        %v618 = vsub.f32 %v585, %v604
        %v619 = vsub.f32 %v586, %v607
        %v620 = vsub.f32 %v587, %v610
        %v621 = vsub.f32 %v588, %v613
        %v622 = vmul.f32 %v614, 1.442695
        %v623 = vpow.pop %v622
        %v624 = vmul.f32 %v615, 1.442695
        %v625 = vpow.pop %v624
        %v626 = vmul.f32 %v616, 1.442695
        %v627 = vpow.pop %v626
        %v628 = vmul.f32 %v617, 1.442695
        %v629 = vpow.pop %v628
        %v630 = vmul.f32 %v618, 1.442695
        %v631 = vpow.pop %v630
        %v632 = vmul.f32 %v619, 1.442695
        %v633 = vpow.pop %v632
        %v634 = vmul.f32 %v620, 1.442695
        %v635 = vpow.pop %v634
        %v636 = vmul.f32 %v621, 1.442695
        %v637 = vpow.pop %v636
        %v638 = vsel %vm589, %v623, 0.0
        %639 = vadd.xlane.f32.xlu0 %v638
        %v640 = vpop.xlane.xlu0 %639
        %v641 = vsel %vm589, %v625, 0.0
        %642 = vadd.xlane.f32.xlu0 %v641
        %v643 = vpop.xlane.xlu0 %642
        %v644 = vsel %vm589, %v627, 0.0
        %645 = vadd.xlane.f32.xlu0 %v644
        %v646 = vpop.xlane.xlu0 %645
        %v647 = vsel %vm589, %v629, 0.0
        %648 = vadd.xlane.f32.xlu0 %v647
        %v649 = vpop.xlane.xlu0 %648
        %v650 = vsel %vm589, %v631, 0.0
        %651 = vadd.xlane.f32.xlu0 %v650
        %v652 = vpop.xlane.xlu0 %651
        %v653 = vsel %vm589, %v633, 0.0
        %654 = vadd.xlane.f32.xlu0 %v653
        %v655 = vpop.xlane.xlu0 %654
        %v656 = vsel %vm589, %v635, 0.0
        %657 = vadd.xlane.f32.xlu0 %v656
        %v658 = vpop.xlane.xlu0 %657
        %v659 = vsel %vm589, %v637, 0.0
        %660 = vadd.xlane.f32.xlu0 %v659
        %v661 = vpop.xlane.xlu0 %660
        %v662 = vrcp.pop %v640
        %v663 = vmul.f32 %v640, %v662
        %v664 = vsub.f32 1.0, %v663
        %v665 = vmul.f32 %v662, %v664
        %v666 = vadd.f32 %v662, %v665
        %vm667 = vweird.f32 %v640
        %vm668 = vweird.f32 %v662
        %vm669 = vmor %vm667, %vm668
        %v670 = vsel %vm669, %v662, %v666
        %v671 = vand.u32 2147483647, %v640
        %vm672 = vcmp.eq.f32.partialorder %v671, 8.507059e+37
        %v673 = vand.u32 %v640, 2147483648
        %v674 = vor.u32 1.1754944e-38, %v673
        %v675 = vsel %vm672, %v674, %v670
        %v676 = vrcp.pop %v643
        %v677 = vmul.f32 %v643, %v676
        %v678 = vsub.f32 1.0, %v677
        %v679 = vmul.f32 %v676, %v678
        %v680 = vadd.f32 %v676, %v679
        %vm681 = vweird.f32 %v643
        %vm682 = vweird.f32 %v676
        %vm683 = vmor %vm681, %vm682
        %v684 = vsel %vm683, %v676, %v680
        %v685 = vand.u32 2147483647, %v643
        %vm686 = vcmp.eq.f32.partialorder %v685, 8.507059e+37
        %v687 = vand.u32 %v643, 2147483648
        %v688 = vor.u32 1.1754944e-38, %v687
        %v689 = vsel %vm686, %v688, %v684
        %v690 = vrcp.pop %v646
        %v691 = vmul.f32 %v646, %v690
        %v692 = vsub.f32 1.0, %v691
        %v693 = vmul.f32 %v690, %v692
        %v694 = vadd.f32 %v690, %v693
        %vm695 = vweird.f32 %v646
        %vm696 = vweird.f32 %v690
        %vm697 = vmor %vm695, %vm696
        %v698 = vsel %vm697, %v690, %v694
        %v699 = vand.u32 2147483647, %v646
        %vm700 = vcmp.eq.f32.partialorder %v699, 8.507059e+37
        %v701 = vand.u32 %v646, 2147483648
        %v702 = vor.u32 1.1754944e-38, %v701
        %v703 = vsel %vm700, %v702, %v698
        %v704 = vrcp.pop %v649
        %v705 = vmul.f32 %v649, %v704
        %v706 = vsub.f32 1.0, %v705
        %v707 = vmul.f32 %v704, %v706
        %v708 = vadd.f32 %v704, %v707
        %vm709 = vweird.f32 %v649
        %vm710 = vweird.f32 %v704
        %vm711 = vmor %vm709, %vm710
        %v712 = vsel %vm711, %v704, %v708
        %v713 = vand.u32 2147483647, %v649
        %vm714 = vcmp.eq.f32.partialorder %v713, 8.507059e+37
        %v715 = vand.u32 %v649, 2147483648
        %v716 = vor.u32 1.1754944e-38, %v715
        %v717 = vsel %vm714, %v716, %v712
        %v718 = vrcp.pop %v652
        %v719 = vmul.f32 %v652, %v718
        %v720 = vsub.f32 1.0, %v719
        %v721 = vmul.f32 %v718, %v720
        %v722 = vadd.f32 %v718, %v721
        %vm723 = vweird.f32 %v652
        %vm724 = vweird.f32 %v718
        %vm725 = vmor %vm723, %vm724
        %v726 = vsel %vm725, %v718, %v722
        %v727 = vand.u32 2147483647, %v652
        %vm728 = vcmp.eq.f32.partialorder %v727, 8.507059e+37
        %v729 = vand.u32 %v652, 2147483648
        %v730 = vor.u32 1.1754944e-38, %v729
        %v731 = vsel %vm728, %v730, %v726
        %v732 = vrcp.pop %v655
        %v733 = vmul.f32 %v655, %v732
        %v734 = vsub.f32 1.0, %v733
        %v735 = vmul.f32 %v732, %v734
        %v736 = vadd.f32 %v732, %v735
        %vm737 = vweird.f32 %v655
        %vm738 = vweird.f32 %v732
        %vm739 = vmor %vm737, %vm738
        %v740 = vsel %vm739, %v732, %v736
        %v741 = vand.u32 2147483647, %v655
        %vm742 = vcmp.eq.f32.partialorder %v741, 8.507059e+37
        %v743 = vand.u32 %v655, 2147483648
        %v744 = vor.u32 1.1754944e-38, %v743
        %v745 = vsel %vm742, %v744, %v740
        %v746 = vrcp.pop %v658
        %v747 = vmul.f32 %v658, %v746
        %v748 = vsub.f32 1.0, %v747
        %v749 = vmul.f32 %v746, %v748
        %v750 = vadd.f32 %v746, %v749
        %vm751 = vweird.f32 %v658
        %vm752 = vweird.f32 %v746
        %vm753 = vmor %vm751, %vm752
        %v754 = vsel %vm753, %v746, %v750
        %v755 = vand.u32 2147483647, %v658
        %vm756 = vcmp.eq.f32.partialorder %v755, 8.507059e+37
        %v757 = vand.u32 %v658, 2147483648
        %v758 = vor.u32 1.1754944e-38, %v757
        %v759 = vsel %vm756, %v758, %v754
        %v760 = vrcp.pop %v661
        %v761 = vmul.f32 %v661, %v760
        %v762 = vsub.f32 1.0, %v761
        %v763 = vmul.f32 %v760, %v762
        %v764 = vadd.f32 %v760, %v763
        %vm765 = vweird.f32 %v661
        %vm766 = vweird.f32 %v760
        %vm767 = vmor %vm765, %vm766
        %v768 = vsel %vm767, %v760, %v764
        %v769 = vand.u32 2147483647, %v661
        %vm770 = vcmp.eq.f32.partialorder %v769, 8.507059e+37
        %v771 = vand.u32 %v661, 2147483648
        %v772 = vor.u32 1.1754944e-38, %v771
        %v773 = vsel %vm770, %v772, %v768
        %v774 = vmul.f32 %v623, %v675
        %v775 = vmul.f32 %v625, %v689
        %v776 = vmul.f32 %v627, %v703
        %v777 = vmul.f32 %v629, %v717
        %v778 = vmul.f32 %v631, %v731
        %v779 = vmul.f32 %v633, %v745
        %v780 = vmul.f32 %v635, %v759
        %v781 = vmul.f32 %v637, %v773
        %v782 = vperm.slane %v774, 0
        %v783 = vperm.slane %v775, 0
        %v784 = vperm.slane %v776, 0
        %v785 = vperm.slane %v777, 0
        %v786 = vperm.slane %v778, 0
        %v787 = vperm.slane %v779, 0
        %v788 = vperm.slane %v780, 0
        %v789 = vperm.slane %v781, 0
        %v790 = vmul.f32 %v252, %v782
        %v791 = vmul.f32 %v253, %v782
        %v792 = vmul.f32 %v254, %v782
        %v793 = vmul.f32 %v255, %v782
        %v794 = vmul.f32 %v256, %v782
        %v795 = vmul.f32 %v257, %v782
        %v796 = vmul.f32 %v258, %v782
        %v797 = vmul.f32 %v259, %v782
        %v798 = vmul.f32 %v260, %v782
        %v799 = vmul.f32 %v261, %v782
        %v800 = vmul.f32 %v262, %v782
        %v801 = vmul.f32 %v263, %v782
        %v802 = vmul.f32 %v264, %v782
        %v803 = vmul.f32 %v265, %v782
        %v804 = vmul.f32 %v266, %v782
        %v805 = vmul.f32 %v267, %v782
        %v806 = vmul.f32 %v268, %v783
        %v807 = vmul.f32 %v269, %v783
        %v808 = vmul.f32 %v270, %v783
        %v809 = vmul.f32 %v271, %v783
        %v810 = vmul.f32 %v272, %v783
        %v811 = vmul.f32 %v273, %v783
        %v812 = vmul.f32 %v274, %v783
        %v813 = vmul.f32 %v275, %v783
        %v814 = vmul.f32 %v276, %v783
        %v815 = vmul.f32 %v277, %v783
        %v816 = vmul.f32 %v278, %v783
        %v817 = vmul.f32 %v279, %v783
        %v818 = vmul.f32 %v280, %v783
        %v819 = vmul.f32 %v281, %v783
        %v820 = vmul.f32 %v282, %v783
        %v821 = vmul.f32 %v283, %v783
        %v822 = vmul.f32 %v284, %v784
        %v823 = vmul.f32 %v285, %v784
        %v824 = vmul.f32 %v286, %v784
        %v825 = vmul.f32 %v287, %v784
        %v826 = vmul.f32 %v288, %v784
        %v827 = vmul.f32 %v289, %v784
        %v828 = vmul.f32 %v290, %v784
        %v829 = vmul.f32 %v291, %v784
        %v830 = vmul.f32 %v292, %v784
        %v831 = vmul.f32 %v293, %v784
        %v832 = vmul.f32 %v294, %v784
        %v833 = vmul.f32 %v295, %v784
        %v834 = vmul.f32 %v296, %v784
        %v835 = vmul.f32 %v297, %v784
        %v836 = vmul.f32 %v298, %v784
        %v837 = vmul.f32 %v299, %v784
        %v838 = vmul.f32 %v300, %v785
        %v839 = vmul.f32 %v301, %v785
        %v840 = vmul.f32 %v302, %v785
        %v841 = vmul.f32 %v303, %v785
        %v842 = vmul.f32 %v304, %v785
        %v843 = vmul.f32 %v305, %v785
        %v844 = vmul.f32 %v306, %v785
        %v845 = vmul.f32 %v307, %v785
        %v846 = vmul.f32 %v308, %v785
        %v847 = vmul.f32 %v309, %v785
        %v848 = vmul.f32 %v310, %v785
        %v849 = vmul.f32 %v311, %v785
        %v850 = vmul.f32 %v312, %v785
        %v851 = vmul.f32 %v313, %v785
        %v852 = vmul.f32 %v314, %v785
        %v853 = vmul.f32 %v315, %v785
        %v854 = vmul.f32 %v316, %v786
        %v855 = vmul.f32 %v317, %v786
        %v856 = vmul.f32 %v318, %v786
        %v857 = vmul.f32 %v319, %v786
        %v858 = vmul.f32 %v320, %v786
        %v859 = vmul.f32 %v321, %v786
        %v860 = vmul.f32 %v322, %v786
        %v861 = vmul.f32 %v323, %v786
        %v862 = vmul.f32 %v324, %v786
        %v863 = vmul.f32 %v325, %v786
        %v864 = vmul.f32 %v326, %v786
        %v865 = vmul.f32 %v327, %v786
        %v866 = vmul.f32 %v328, %v786
        %v867 = vmul.f32 %v329, %v786
        %v868 = vmul.f32 %v330, %v786
        %v869 = vmul.f32 %v331, %v786
        %v870 = vmul.f32 %v332, %v787
        %v871 = vmul.f32 %v333, %v787
        %v872 = vmul.f32 %v334, %v787
        %v873 = vmul.f32 %v335, %v787
        %v874 = vmul.f32 %v336, %v787
        %v875 = vmul.f32 %v337, %v787
        %v876 = vmul.f32 %v338, %v787
        %v877 = vmul.f32 %v339, %v787
        %v878 = vmul.f32 %v340, %v787
        %v879 = vmul.f32 %v341, %v787
        %v880 = vmul.f32 %v342, %v787
        %v881 = vmul.f32 %v343, %v787
        %v882 = vmul.f32 %v344, %v787
        %v883 = vmul.f32 %v345, %v787
        %v884 = vmul.f32 %v346, %v787
        %v885 = vmul.f32 %v347, %v787
        %v886 = vmul.f32 %v348, %v788
        %v887 = vmul.f32 %v349, %v788
        %v888 = vmul.f32 %v350, %v788
        %v889 = vmul.f32 %v351, %v788
        %v890 = vmul.f32 %v352, %v788
        %v891 = vmul.f32 %v353, %v788
        %v892 = vmul.f32 %v354, %v788
        %v893 = vmul.f32 %v355, %v788
        %v894 = vmul.f32 %v356, %v788
        %v895 = vmul.f32 %v357, %v788
        %v896 = vmul.f32 %v358, %v788
        %v897 = vmul.f32 %v359, %v788
        %v898 = vmul.f32 %v360, %v788
        %v899 = vmul.f32 %v361, %v788
        %v900 = vmul.f32 %v362, %v788
        %v901 = vmul.f32 %v363, %v788
        %v902 = vmul.f32 %v364, %v789
        %v903 = vmul.f32 %v365, %v789
        %v904 = vmul.f32 %v366, %v789
        %v905 = vmul.f32 %v367, %v789
        %v906 = vmul.f32 %v368, %v789
        %v907 = vmul.f32 %v369, %v789
        %v908 = vmul.f32 %v370, %v789
        %v909 = vmul.f32 %v371, %v789
        %v910 = vmul.f32 %v372, %v789
        %v911 = vmul.f32 %v373, %v789
        %v912 = vmul.f32 %v374, %v789
        %v913 = vmul.f32 %v375, %v789
        %v914 = vmul.f32 %v376, %v789
        %v915 = vmul.f32 %v377, %v789
        %v916 = vmul.f32 %v378, %v789
        %v917 = vmul.f32 %v379, %v789
        %918 = vadd.xlane.f32.xlu0 %v790
        %v919 = vpop.xlane.xlu0 %918
        %920 = vadd.xlane.f32.xlu0 %v791
        %v921 = vpop.xlane.xlu0 %920
        %922 = vadd.xlane.f32.xlu0 %v792
        %v923 = vpop.xlane.xlu0 %922
        %924 = vadd.xlane.f32.xlu0 %v793
        %v925 = vpop.xlane.xlu0 %924
        %926 = vadd.xlane.f32.xlu0 %v794
        %v927 = vpop.xlane.xlu0 %926
        %928 = vadd.xlane.f32.xlu0 %v795
        %v929 = vpop.xlane.xlu0 %928
        %930 = vadd.xlane.f32.xlu0 %v796
        %v931 = vpop.xlane.xlu0 %930
        %932 = vadd.xlane.f32.xlu0 %v797
        %v933 = vpop.xlane.xlu0 %932
        %934 = vadd.xlane.f32.xlu0 %v798
        %v935 = vpop.xlane.xlu0 %934
        %936 = vadd.xlane.f32.xlu0 %v799
        %v937 = vpop.xlane.xlu0 %936
        %938 = vadd.xlane.f32.xlu0 %v800
        %v939 = vpop.xlane.xlu0 %938
        %940 = vadd.xlane.f32.xlu0 %v801
        %v941 = vpop.xlane.xlu0 %940
        %942 = vadd.xlane.f32.xlu0 %v802
        %v943 = vpop.xlane.xlu0 %942
        %944 = vadd.xlane.f32.xlu0 %v803
        %v945 = vpop.xlane.xlu0 %944
        %946 = vadd.xlane.f32.xlu0 %v804
        %v947 = vpop.xlane.xlu0 %946
        %948 = vadd.xlane.f32.xlu0 %v805
        %v949 = vpop.xlane.xlu0 %948
        %950 = vadd.xlane.f32.xlu0 %v806
        %v951 = vpop.xlane.xlu0 %950
        %952 = vadd.xlane.f32.xlu0 %v807
        %v953 = vpop.xlane.xlu0 %952
        %954 = vadd.xlane.f32.xlu0 %v808
        %v955 = vpop.xlane.xlu0 %954
        %956 = vadd.xlane.f32.xlu0 %v809
        %v957 = vpop.xlane.xlu0 %956
        %958 = vadd.xlane.f32.xlu0 %v810
        %v959 = vpop.xlane.xlu0 %958
        %960 = vadd.xlane.f32.xlu0 %v811
        %v961 = vpop.xlane.xlu0 %960
        %962 = vadd.xlane.f32.xlu0 %v812
        %v963 = vpop.xlane.xlu0 %962
        %964 = vadd.xlane.f32.xlu0 %v813
        %v965 = vpop.xlane.xlu0 %964
        %966 = vadd.xlane.f32.xlu0 %v814
        %v967 = vpop.xlane.xlu0 %966
        %968 = vadd.xlane.f32.xlu0 %v815
        %v969 = vpop.xlane.xlu0 %968
        %970 = vadd.xlane.f32.xlu0 %v816
        %v971 = vpop.xlane.xlu0 %970
        %972 = vadd.xlane.f32.xlu0 %v817
        %v973 = vpop.xlane.xlu0 %972
        %974 = vadd.xlane.f32.xlu0 %v818
        %v975 = vpop.xlane.xlu0 %974
        %976 = vadd.xlane.f32.xlu0 %v819
        %v977 = vpop.xlane.xlu0 %976
        %978 = vadd.xlane.f32.xlu0 %v820
        %v979 = vpop.xlane.xlu0 %978
        %980 = vadd.xlane.f32.xlu0 %v821
        %v981 = vpop.xlane.xlu0 %980
        %982 = vadd.xlane.f32.xlu0 %v822
        %v983 = vpop.xlane.xlu0 %982
        %984 = vadd.xlane.f32.xlu0 %v823
        %v985 = vpop.xlane.xlu0 %984
        %986 = vadd.xlane.f32.xlu0 %v824
        %v987 = vpop.xlane.xlu0 %986
        %988 = vadd.xlane.f32.xlu0 %v825
        %v989 = vpop.xlane.xlu0 %988
        %990 = vadd.xlane.f32.xlu0 %v826
        %v991 = vpop.xlane.xlu0 %990
        %992 = vadd.xlane.f32.xlu0 %v827
        %v993 = vpop.xlane.xlu0 %992
        %994 = vadd.xlane.f32.xlu0 %v828
        %v995 = vpop.xlane.xlu0 %994
        %996 = vadd.xlane.f32.xlu0 %v829
        %v997 = vpop.xlane.xlu0 %996
        %998 = vadd.xlane.f32.xlu0 %v830
        %v999 = vpop.xlane.xlu0 %998
        %1000 = vadd.xlane.f32.xlu0 %v831
        %v1001 = vpop.xlane.xlu0 %1000
        %1002 = vadd.xlane.f32.xlu0 %v832
        %v1003 = vpop.xlane.xlu0 %1002
        %1004 = vadd.xlane.f32.xlu0 %v833
        %v1005 = vpop.xlane.xlu0 %1004
        %1006 = vadd.xlane.f32.xlu0 %v834
        %v1007 = vpop.xlane.xlu0 %1006
        %1008 = vadd.xlane.f32.xlu0 %v835
        %v1009 = vpop.xlane.xlu0 %1008
        %1010 = vadd.xlane.f32.xlu0 %v836
        %v1011 = vpop.xlane.xlu0 %1010
        %1012 = vadd.xlane.f32.xlu0 %v837
        %v1013 = vpop.xlane.xlu0 %1012
        %1014 = vadd.xlane.f32.xlu0 %v838
        %v1015 = vpop.xlane.xlu0 %1014
        %1016 = vadd.xlane.f32.xlu0 %v839
        %v1017 = vpop.xlane.xlu0 %1016
        %1018 = vadd.xlane.f32.xlu0 %v840
        %v1019 = vpop.xlane.xlu0 %1018
        %1020 = vadd.xlane.f32.xlu0 %v841
        %v1021 = vpop.xlane.xlu0 %1020
        %1022 = vadd.xlane.f32.xlu0 %v842
        %v1023 = vpop.xlane.xlu0 %1022
        %1024 = vadd.xlane.f32.xlu0 %v843
        %v1025 = vpop.xlane.xlu0 %1024
        %1026 = vadd.xlane.f32.xlu0 %v844
        %v1027 = vpop.xlane.xlu0 %1026
        %1028 = vadd.xlane.f32.xlu0 %v845
        %v1029 = vpop.xlane.xlu0 %1028
        %1030 = vadd.xlane.f32.xlu0 %v846
        %v1031 = vpop.xlane.xlu0 %1030
        %1032 = vadd.xlane.f32.xlu0 %v847
        %v1033 = vpop.xlane.xlu0 %1032
        %1034 = vadd.xlane.f32.xlu0 %v848
        %v1035 = vpop.xlane.xlu0 %1034
        %1036 = vadd.xlane.f32.xlu0 %v849
        %v1037 = vpop.xlane.xlu0 %1036
        %1038 = vadd.xlane.f32.xlu0 %v850
        %v1039 = vpop.xlane.xlu0 %1038
        %1040 = vadd.xlane.f32.xlu0 %v851
        %v1041 = vpop.xlane.xlu0 %1040
        %1042 = vadd.xlane.f32.xlu0 %v852
        %v1043 = vpop.xlane.xlu0 %1042
        %1044 = vadd.xlane.f32.xlu0 %v853
        %v1045 = vpop.xlane.xlu0 %1044
        %1046 = vadd.xlane.f32.xlu0 %v854
        %v1047 = vpop.xlane.xlu0 %1046
        %1048 = vadd.xlane.f32.xlu0 %v855
        %v1049 = vpop.xlane.xlu0 %1048
        %1050 = vadd.xlane.f32.xlu0 %v856
        %v1051 = vpop.xlane.xlu0 %1050
        %1052 = vadd.xlane.f32.xlu0 %v857
        %v1053 = vpop.xlane.xlu0 %1052
        %1054 = vadd.xlane.f32.xlu0 %v858
        %v1055 = vpop.xlane.xlu0 %1054
        %1056 = vadd.xlane.f32.xlu0 %v859
        %v1057 = vpop.xlane.xlu0 %1056
        %1058 = vadd.xlane.f32.xlu0 %v860
        %v1059 = vpop.xlane.xlu0 %1058
        %1060 = vadd.xlane.f32.xlu0 %v861
        %v1061 = vpop.xlane.xlu0 %1060
        %1062 = vadd.xlane.f32.xlu0 %v862
        %v1063 = vpop.xlane.xlu0 %1062
        %1064 = vadd.xlane.f32.xlu0 %v863
        %v1065 = vpop.xlane.xlu0 %1064
        %1066 = vadd.xlane.f32.xlu0 %v864
        %v1067 = vpop.xlane.xlu0 %1066
        %1068 = vadd.xlane.f32.xlu0 %v865
        %v1069 = vpop.xlane.xlu0 %1068
        %1070 = vadd.xlane.f32.xlu0 %v866
        %v1071 = vpop.xlane.xlu0 %1070
        %1072 = vadd.xlane.f32.xlu0 %v867
        %v1073 = vpop.xlane.xlu0 %1072
        %1074 = vadd.xlane.f32.xlu0 %v868
        %v1075 = vpop.xlane.xlu0 %1074
        %1076 = vadd.xlane.f32.xlu0 %v869
        %v1077 = vpop.xlane.xlu0 %1076
        %1078 = vadd.xlane.f32.xlu0 %v870
        %v1079 = vpop.xlane.xlu0 %1078
        %1080 = vadd.xlane.f32.xlu0 %v871
        %v1081 = vpop.xlane.xlu0 %1080
        %1082 = vadd.xlane.f32.xlu0 %v872
        %v1083 = vpop.xlane.xlu0 %1082
        %1084 = vadd.xlane.f32.xlu0 %v873
        %v1085 = vpop.xlane.xlu0 %1084
        %1086 = vadd.xlane.f32.xlu0 %v874
        %v1087 = vpop.xlane.xlu0 %1086
        %1088 = vadd.xlane.f32.xlu0 %v875
        %v1089 = vpop.xlane.xlu0 %1088
        %1090 = vadd.xlane.f32.xlu0 %v876
        %v1091 = vpop.xlane.xlu0 %1090
        %1092 = vadd.xlane.f32.xlu0 %v877
        %v1093 = vpop.xlane.xlu0 %1092
        %1094 = vadd.xlane.f32.xlu0 %v878
        %v1095 = vpop.xlane.xlu0 %1094
        %1096 = vadd.xlane.f32.xlu0 %v879
        %v1097 = vpop.xlane.xlu0 %1096
        %1098 = vadd.xlane.f32.xlu0 %v880
        %v1099 = vpop.xlane.xlu0 %1098
        %1100 = vadd.xlane.f32.xlu0 %v881
        %v1101 = vpop.xlane.xlu0 %1100
        %1102 = vadd.xlane.f32.xlu0 %v882
        %v1103 = vpop.xlane.xlu0 %1102
        %1104 = vadd.xlane.f32.xlu0 %v883
        %v1105 = vpop.xlane.xlu0 %1104
        %1106 = vadd.xlane.f32.xlu0 %v884
        %v1107 = vpop.xlane.xlu0 %1106
        %1108 = vadd.xlane.f32.xlu0 %v885
        %v1109 = vpop.xlane.xlu0 %1108
        %1110 = vadd.xlane.f32.xlu0 %v886
        %v1111 = vpop.xlane.xlu0 %1110
        %1112 = vadd.xlane.f32.xlu0 %v887
        %v1113 = vpop.xlane.xlu0 %1112
        %1114 = vadd.xlane.f32.xlu0 %v888
        %v1115 = vpop.xlane.xlu0 %1114
        %1116 = vadd.xlane.f32.xlu0 %v889
        %v1117 = vpop.xlane.xlu0 %1116
        %1118 = vadd.xlane.f32.xlu0 %v890
        %v1119 = vpop.xlane.xlu0 %1118
        %1120 = vadd.xlane.f32.xlu0 %v891
        %v1121 = vpop.xlane.xlu0 %1120
        %1122 = vadd.xlane.f32.xlu0 %v892
        %v1123 = vpop.xlane.xlu0 %1122
        %1124 = vadd.xlane.f32.xlu0 %v893
        %v1125 = vpop.xlane.xlu0 %1124
        %1126 = vadd.xlane.f32.xlu0 %v894
        %v1127 = vpop.xlane.xlu0 %1126
        %1128 = vadd.xlane.f32.xlu0 %v895
        %v1129 = vpop.xlane.xlu0 %1128
        %1130 = vadd.xlane.f32.xlu0 %v896
        %v1131 = vpop.xlane.xlu0 %1130
        %1132 = vadd.xlane.f32.xlu0 %v897
        %v1133 = vpop.xlane.xlu0 %1132
        %1134 = vadd.xlane.f32.xlu0 %v898
        %v1135 = vpop.xlane.xlu0 %1134
        %1136 = vadd.xlane.f32.xlu0 %v899
        %v1137 = vpop.xlane.xlu0 %1136
        %1138 = vadd.xlane.f32.xlu0 %v900
        %v1139 = vpop.xlane.xlu0 %1138
        %1140 = vadd.xlane.f32.xlu0 %v901
        %v1141 = vpop.xlane.xlu0 %1140
        %1142 = vadd.xlane.f32.xlu0 %v902
        %v1143 = vpop.xlane.xlu0 %1142
        %1144 = vadd.xlane.f32.xlu0 %v903
        %v1145 = vpop.xlane.xlu0 %1144
        %1146 = vadd.xlane.f32.xlu0 %v904
        %v1147 = vpop.xlane.xlu0 %1146
        %1148 = vadd.xlane.f32.xlu0 %v905
        %v1149 = vpop.xlane.xlu0 %1148
        %1150 = vadd.xlane.f32.xlu0 %v906
        %v1151 = vpop.xlane.xlu0 %1150
        %1152 = vadd.xlane.f32.xlu0 %v907
        %v1153 = vpop.xlane.xlu0 %1152
        %1154 = vadd.xlane.f32.xlu0 %v908
        %v1155 = vpop.xlane.xlu0 %1154
        %1156 = vadd.xlane.f32.xlu0 %v909
        %v1157 = vpop.xlane.xlu0 %1156
        %1158 = vadd.xlane.f32.xlu0 %v910
        %v1159 = vpop.xlane.xlu0 %1158
        %1160 = vadd.xlane.f32.xlu0 %v911
        %v1161 = vpop.xlane.xlu0 %1160
        %1162 = vadd.xlane.f32.xlu0 %v912
        %v1163 = vpop.xlane.xlu0 %1162
        %1164 = vadd.xlane.f32.xlu0 %v913
        %v1165 = vpop.xlane.xlu0 %1164
        %1166 = vadd.xlane.f32.xlu0 %v914
        %v1167 = vpop.xlane.xlu0 %1166
        %1168 = vadd.xlane.f32.xlu0 %v915
        %v1169 = vpop.xlane.xlu0 %1168
        %1170 = vadd.xlane.f32.xlu0 %v916
        %v1171 = vpop.xlane.xlu0 %1170
        %1172 = vadd.xlane.f32.xlu0 %v917
        %v1173 = vpop.xlane.xlu0 %1172
        %v1182 = vrot.slane %v775, 7
        %vm1183 = vcmask 1041409
        %v1184 = vsel %vm1183, %v1182, %v774
        %v1185 = vrot.slane %v776, 6
        %vm1186 = vcmask 1042434
        %v1187 = vsel %vm1186, %v1185, %v1184
        %v1188 = vrot.slane %v777, 5
        %vm1189 = vcmask 1043459
        %v1190 = vsel %vm1189, %v1188, %v1187
        %v1191 = vrot.slane %v778, 4
        %vm1192 = vcmask 1044484
        %v1193 = vsel %vm1192, %v1191, %v1190
        %v1194 = vrot.slane %v779, 3
        %vm1195 = vcmask 1045509
        %v1196 = vsel %vm1195, %v1194, %v1193
        %v1197 = vrot.slane %v780, 2
        %vm1198 = vcmask 1046534
        %v1199 = vsel %vm1198, %v1197, %v1196
        %v1200 = vrot.slane %v781, 1
        %vm1201 = vcmask 1047559
        %v1202 = vsel %vm1201, %v1200, %v1199
        %1204 = vst [vmem:[%s243] sm:$0xff] %v1202
        %v1333 = vlaneseq
        %v1334 = vand.u32 %v1333, 127
        %v1335 = vperm.slane %v919, %v1334
        %v1336 = vadd.s32 %v1334, 4294967288
        %v1337 = vperm.slane %v921, %v1336
        %vm1338 = vcmask 130112
        %v1339 = vsel %vm1338, %v1337, %v1335
        %v1340 = vadd.s32 %v1334, 4294967280
        %v1341 = vperm.slane %v923, %v1340
        %vm1342 = vcmask 195712
        %v1343 = vsel %vm1342, %v1341, %v1339
        %v1344 = vadd.s32 %v1334, 4294967272
        %v1345 = vperm.slane %v925, %v1344
        %vm1346 = vcmask 261312
        %v1347 = vsel %vm1346, %v1345, %v1343
        %v1348 = vadd.s32 %v1334, 4294967264
        %v1349 = vperm.slane %v927, %v1348
        %vm1350 = vcmask 326912
        %v1351 = vsel %vm1350, %v1349, %v1347
        %v1352 = vadd.s32 %v1334, 4294967256
        %v1353 = vperm.slane %v929, %v1352
        %vm1354 = vcmask 392512
        %v1355 = vsel %vm1354, %v1353, %v1351
        %v1356 = vadd.s32 %v1334, 4294967248
        %v1357 = vperm.slane %v931, %v1356
        %vm1358 = vcmask 458112
        %v1359 = vsel %vm1358, %v1357, %v1355
        %v1360 = vadd.s32 %v1334, 4294967240
        %v1361 = vperm.slane %v933, %v1360
        %vm1362 = vcmask 523712
        %v1363 = vsel %vm1362, %v1361, %v1359
        %v1364 = vadd.s32 %v1334, 4294967232
        %v1365 = vperm.slane %v935, %v1364
        %vm1366 = vcmask 589312
        %v1367 = vsel %vm1366, %v1365, %v1363
        %v1368 = vadd.s32 %v1334, 4294967224
        %v1369 = vperm.slane %v937, %v1368
        %vm1370 = vcmask 654912
        %v1371 = vsel %vm1370, %v1369, %v1367
        %v1372 = vadd.s32 %v1334, 4294967216
        %v1373 = vperm.slane %v939, %v1372
        %vm1374 = vcmask 720512
        %v1375 = vsel %vm1374, %v1373, %v1371
        %v1376 = vadd.s32 %v1334, 4294967208
        %v1377 = vperm.slane %v941, %v1376
        %vm1378 = vcmask 786112
        %v1379 = vsel %vm1378, %v1377, %v1375
        %v1380 = vadd.s32 %v1334, 4294967200
        %v1381 = vperm.slane %v943, %v1380
        %vm1382 = vcmask 851712
        %v1383 = vsel %vm1382, %v1381, %v1379
        %v1384 = vadd.s32 %v1334, 4294967192
        %v1385 = vperm.slane %v945, %v1384
        %vm1386 = vcmask 917312
        %v1387 = vsel %vm1386, %v1385, %v1383
        %v1388 = vadd.s32 %v1334, 4294967184
        %v1389 = vperm.slane %v947, %v1388
        %vm1390 = vcmask 982912
        %v1391 = vsel %vm1390, %v1389, %v1387
        %v1392 = vadd.s32 %v1334, 4294967176
        %v1393 = vperm.slane %v949, %v1392
        %vm1394 = vcmask 1048512
        %v1395 = vsel %vm1394, %v1393, %v1391
        %v1396 = vperm.slane %v951, %v1334
        %v1397 = vperm.slane %v953, %v1336
        %v1398 = vsel %vm1338, %v1397, %v1396
        %v1399 = vperm.slane %v955, %v1340
        %v1400 = vsel %vm1342, %v1399, %v1398
        %v1401 = vperm.slane %v957, %v1344
        %v1402 = vsel %vm1346, %v1401, %v1400
        %v1403 = vperm.slane %v959, %v1348
        %v1404 = vsel %vm1350, %v1403, %v1402
        %v1405 = vperm.slane %v961, %v1352
        %v1406 = vsel %vm1354, %v1405, %v1404
        %v1407 = vperm.slane %v963, %v1356
        %v1408 = vsel %vm1358, %v1407, %v1406
        %v1409 = vperm.slane %v965, %v1360
        %v1410 = vsel %vm1362, %v1409, %v1408
        %v1411 = vperm.slane %v967, %v1364
        %v1412 = vsel %vm1366, %v1411, %v1410
        %v1413 = vperm.slane %v969, %v1368
        %v1414 = vsel %vm1370, %v1413, %v1412
        %v1415 = vperm.slane %v971, %v1372
        %v1416 = vsel %vm1374, %v1415, %v1414
        %v1417 = vperm.slane %v973, %v1376
        %v1418 = vsel %vm1378, %v1417, %v1416
        %v1419 = vperm.slane %v975, %v1380
        %v1420 = vsel %vm1382, %v1419, %v1418
        %v1421 = vperm.slane %v977, %v1384
        %v1422 = vsel %vm1386, %v1421, %v1420
        %v1423 = vperm.slane %v979, %v1388
        %v1424 = vsel %vm1390, %v1423, %v1422
        %v1425 = vperm.slane %v981, %v1392
        %v1426 = vsel %vm1394, %v1425, %v1424
        %v1427 = vperm.slane %v983, %v1334
        %v1428 = vperm.slane %v985, %v1336
        %v1429 = vsel %vm1338, %v1428, %v1427
        %v1430 = vperm.slane %v987, %v1340
        %v1431 = vsel %vm1342, %v1430, %v1429
        %v1432 = vperm.slane %v989, %v1344
        %v1433 = vsel %vm1346, %v1432, %v1431
        %v1434 = vperm.slane %v991, %v1348
        %v1435 = vsel %vm1350, %v1434, %v1433
        %v1436 = vperm.slane %v993, %v1352
        %v1437 = vsel %vm1354, %v1436, %v1435
        %v1438 = vperm.slane %v995, %v1356
        %v1439 = vsel %vm1358, %v1438, %v1437
        %v1440 = vperm.slane %v997, %v1360
        %v1441 = vsel %vm1362, %v1440, %v1439
        %v1442 = vperm.slane %v999, %v1364
        %v1443 = vsel %vm1366, %v1442, %v1441
        %v1444 = vperm.slane %v1001, %v1368
        %v1445 = vsel %vm1370, %v1444, %v1443
        %v1446 = vperm.slane %v1003, %v1372
        %v1447 = vsel %vm1374, %v1446, %v1445
        %v1448 = vperm.slane %v1005, %v1376
        %v1449 = vsel %vm1378, %v1448, %v1447
        %v1450 = vperm.slane %v1007, %v1380
        %v1451 = vsel %vm1382, %v1450, %v1449
        %v1452 = vperm.slane %v1009, %v1384
        %v1453 = vsel %vm1386, %v1452, %v1451
        %v1454 = vperm.slane %v1011, %v1388
        %v1455 = vsel %vm1390, %v1454, %v1453
        %v1456 = vperm.slane %v1013, %v1392
        %v1457 = vsel %vm1394, %v1456, %v1455
        %v1458 = vperm.slane %v1015, %v1334
        %v1459 = vperm.slane %v1017, %v1336
        %v1460 = vsel %vm1338, %v1459, %v1458
        %v1461 = vperm.slane %v1019, %v1340
        %v1462 = vsel %vm1342, %v1461, %v1460
        %v1463 = vperm.slane %v1021, %v1344
        %v1464 = vsel %vm1346, %v1463, %v1462
        %v1465 = vperm.slane %v1023, %v1348
        %v1466 = vsel %vm1350, %v1465, %v1464
        %v1467 = vperm.slane %v1025, %v1352
        %v1468 = vsel %vm1354, %v1467, %v1466
        %v1469 = vperm.slane %v1027, %v1356
        %v1470 = vsel %vm1358, %v1469, %v1468
        %v1471 = vperm.slane %v1029, %v1360
        %v1472 = vsel %vm1362, %v1471, %v1470
        %v1473 = vperm.slane %v1031, %v1364
        %v1474 = vsel %vm1366, %v1473, %v1472
        %v1475 = vperm.slane %v1033, %v1368
        %v1476 = vsel %vm1370, %v1475, %v1474
        %v1477 = vperm.slane %v1035, %v1372
        %v1478 = vsel %vm1374, %v1477, %v1476
        %v1479 = vperm.slane %v1037, %v1376
        %v1480 = vsel %vm1378, %v1479, %v1478
        %v1481 = vperm.slane %v1039, %v1380
        %v1482 = vsel %vm1382, %v1481, %v1480
        %v1483 = vperm.slane %v1041, %v1384
        %v1484 = vsel %vm1386, %v1483, %v1482
        %v1485 = vperm.slane %v1043, %v1388
        %v1486 = vsel %vm1390, %v1485, %v1484
        %v1487 = vperm.slane %v1045, %v1392
        %v1488 = vsel %vm1394, %v1487, %v1486
        %v1489 = vperm.slane %v1047, %v1334
        %v1490 = vperm.slane %v1049, %v1336
        %v1491 = vsel %vm1338, %v1490, %v1489
        %v1492 = vperm.slane %v1051, %v1340
        %v1493 = vsel %vm1342, %v1492, %v1491
        %v1494 = vperm.slane %v1053, %v1344
        %v1495 = vsel %vm1346, %v1494, %v1493
        %v1496 = vperm.slane %v1055, %v1348
        %v1497 = vsel %vm1350, %v1496, %v1495
        %v1498 = vperm.slane %v1057, %v1352
        %v1499 = vsel %vm1354, %v1498, %v1497
        %v1500 = vperm.slane %v1059, %v1356
        %v1501 = vsel %vm1358, %v1500, %v1499
        %v1502 = vperm.slane %v1061, %v1360
        %v1503 = vsel %vm1362, %v1502, %v1501
        %v1504 = vperm.slane %v1063, %v1364
        %v1505 = vsel %vm1366, %v1504, %v1503
        %v1506 = vperm.slane %v1065, %v1368
        %v1507 = vsel %vm1370, %v1506, %v1505
        %v1508 = vperm.slane %v1067, %v1372
        %v1509 = vsel %vm1374, %v1508, %v1507
        %v1510 = vperm.slane %v1069, %v1376
        %v1511 = vsel %vm1378, %v1510, %v1509
        %v1512 = vperm.slane %v1071, %v1380
        %v1513 = vsel %vm1382, %v1512, %v1511
        %v1514 = vperm.slane %v1073, %v1384
        %v1515 = vsel %vm1386, %v1514, %v1513
        %v1516 = vperm.slane %v1075, %v1388
        %v1517 = vsel %vm1390, %v1516, %v1515
        %v1518 = vperm.slane %v1077, %v1392
        %v1519 = vsel %vm1394, %v1518, %v1517
        %v1520 = vperm.slane %v1079, %v1334
        %v1521 = vperm.slane %v1081, %v1336
        %v1522 = vsel %vm1338, %v1521, %v1520
        %v1523 = vperm.slane %v1083, %v1340
        %v1524 = vsel %vm1342, %v1523, %v1522
        %v1525 = vperm.slane %v1085, %v1344
        %v1526 = vsel %vm1346, %v1525, %v1524
        %v1527 = vperm.slane %v1087, %v1348
        %v1528 = vsel %vm1350, %v1527, %v1526
        %v1529 = vperm.slane %v1089, %v1352
        %v1530 = vsel %vm1354, %v1529, %v1528
        %v1531 = vperm.slane %v1091, %v1356
        %v1532 = vsel %vm1358, %v1531, %v1530
        %v1533 = vperm.slane %v1093, %v1360
        %v1534 = vsel %vm1362, %v1533, %v1532
        %v1535 = vperm.slane %v1095, %v1364
        %v1536 = vsel %vm1366, %v1535, %v1534
        %v1537 = vperm.slane %v1097, %v1368
        %v1538 = vsel %vm1370, %v1537, %v1536
        %v1539 = vperm.slane %v1099, %v1372
        %v1540 = vsel %vm1374, %v1539, %v1538
        %v1541 = vperm.slane %v1101, %v1376
        %v1542 = vsel %vm1378, %v1541, %v1540
        %v1543 = vperm.slane %v1103, %v1380
        %v1544 = vsel %vm1382, %v1543, %v1542
        %v1545 = vperm.slane %v1105, %v1384
        %v1546 = vsel %vm1386, %v1545, %v1544
        %v1547 = vperm.slane %v1107, %v1388
        %v1548 = vsel %vm1390, %v1547, %v1546
        %v1549 = vperm.slane %v1109, %v1392
        %v1550 = vsel %vm1394, %v1549, %v1548
        %v1551 = vperm.slane %v1111, %v1334
        %v1552 = vperm.slane %v1113, %v1336
        %v1553 = vsel %vm1338, %v1552, %v1551
        %v1554 = vperm.slane %v1115, %v1340
        %v1555 = vsel %vm1342, %v1554, %v1553
        %v1556 = vperm.slane %v1117, %v1344
        %v1557 = vsel %vm1346, %v1556, %v1555
        %v1558 = vperm.slane %v1119, %v1348
        %v1559 = vsel %vm1350, %v1558, %v1557
        %v1560 = vperm.slane %v1121, %v1352
        %v1561 = vsel %vm1354, %v1560, %v1559
        %v1562 = vperm.slane %v1123, %v1356
        %v1563 = vsel %vm1358, %v1562, %v1561
        %v1564 = vperm.slane %v1125, %v1360
        %v1565 = vsel %vm1362, %v1564, %v1563
        %v1566 = vperm.slane %v1127, %v1364
        %v1567 = vsel %vm1366, %v1566, %v1565
        %v1568 = vperm.slane %v1129, %v1368
        %v1569 = vsel %vm1370, %v1568, %v1567
        %v1570 = vperm.slane %v1131, %v1372
        %v1571 = vsel %vm1374, %v1570, %v1569
        %v1572 = vperm.slane %v1133, %v1376
        %v1573 = vsel %vm1378, %v1572, %v1571
        %v1574 = vperm.slane %v1135, %v1380
        %v1575 = vsel %vm1382, %v1574, %v1573
        %v1576 = vperm.slane %v1137, %v1384
        %v1577 = vsel %vm1386, %v1576, %v1575
        %v1578 = vperm.slane %v1139, %v1388
        %v1579 = vsel %vm1390, %v1578, %v1577
        %v1580 = vperm.slane %v1141, %v1392
        %v1581 = vsel %vm1394, %v1580, %v1579
        %v1582 = vperm.slane %v1143, %v1334
        %v1583 = vperm.slane %v1145, %v1336
        %v1584 = vsel %vm1338, %v1583, %v1582
        %v1585 = vperm.slane %v1147, %v1340
        %v1586 = vsel %vm1342, %v1585, %v1584
        %v1587 = vperm.slane %v1149, %v1344
        %v1588 = vsel %vm1346, %v1587, %v1586
        %v1589 = vperm.slane %v1151, %v1348
        %v1590 = vsel %vm1350, %v1589, %v1588
        %v1591 = vperm.slane %v1153, %v1352
        %v1592 = vsel %vm1354, %v1591, %v1590
        %v1593 = vperm.slane %v1155, %v1356
        %v1594 = vsel %vm1358, %v1593, %v1592
        %v1595 = vperm.slane %v1157, %v1360
        %v1596 = vsel %vm1362, %v1595, %v1594
        %v1597 = vperm.slane %v1159, %v1364
        %v1598 = vsel %vm1366, %v1597, %v1596
        %v1599 = vperm.slane %v1161, %v1368
        %v1600 = vsel %vm1370, %v1599, %v1598
        %v1601 = vperm.slane %v1163, %v1372
        %v1602 = vsel %vm1374, %v1601, %v1600
        %v1603 = vperm.slane %v1165, %v1376
        %v1604 = vsel %vm1378, %v1603, %v1602
        %v1605 = vperm.slane %v1167, %v1380
        %v1606 = vsel %vm1382, %v1605, %v1604
        %v1607 = vperm.slane %v1169, %v1384
        %v1608 = vsel %vm1386, %v1607, %v1606
        %v1609 = vperm.slane %v1171, %v1388
        %v1610 = vsel %vm1390, %v1609, %v1608
        %v1611 = vperm.slane %v1173, %v1392
        %v1612 = vsel %vm1394, %v1611, %v1610
        %v1613 = vsel %vm1183, %v1426, %v1395
        %v1614 = vsel %vm1186, %v1457, %v1613
        %v1615 = vsel %vm1189, %v1488, %v1614
        %v1616 = vsel %vm1192, %v1519, %v1615
        %v1617 = vsel %vm1195, %v1550, %v1616
        %v1618 = vsel %vm1198, %v1581, %v1617
        %v1619 = vsel %vm1201, %v1612, %v1618
        %1621 = vst [vmem:[%s236] sm:$0xff] %v1619
        %s1622 = sand.u32 %s106, 1
        %s1623 = scalar_lea.sflag [#allocation4], %s1622
        %s1624 = sand.u32 %s106, 1
        %s1625 = smul.addr %s1624, 8
        %s1626 = scalar_lea.vmem [#allocation5], %s1625
        %s1627 = sand.u32 %s132, 1
        %s1628 = scalar_lea.sflag [#allocation7], %s1627
        %s1629 = sand.u32 %s132, 1
        %s1630 = smul.addr %s1629, 8
        %s1631 = scalar_lea.vmem [#allocation6], %s1630
        // Predicated region
        $region37: #{tpu_custom_call.1} parent=31 // pred_check
          %p1632 = pneg %p116
        $region38: #{tpu_custom_call.1} parent=31 // pred_check_branch
          %1634 = sbr.rel (%p1632) target = $region40
        $region39: #{tpu_custom_call.1} parent=31 // pred_region
          %1636 = vsyncadd %s1623, 0
          %s1637 = smul.addr %s25, 8
          %s1638 = scalar_lea.hbm %s3, %s1637
          %s1640 = sshll.u32 %s1626, 4
          %s1641 = int_to_ptr.vmem [resolvable:$true] %s1640
          %s1642 = sshll.u32 %s1638, 4
          %s1643 = int_to_ptr.hbm [resolvable:$true] %s1642
          %1645 = dma.vmem_to_hbm [thread:$0]  %s1641, 128, %s1643, %s1623
        $region40: #{tpu_custom_call.1} parent=31 // pred_fallthru
          _
        // Predicated region
        $region41: #{tpu_custom_call.1} parent=31 // pred_check
          %p1646 = pneg %p142
        $region42: #{tpu_custom_call.1} parent=31 // pred_check_branch
          %1648 = sbr.rel (%p1646) target = $region44
        $region43: #{tpu_custom_call.1} parent=31 // pred_region
          %1650 = vsyncadd %s1628, 0
          %s1651 = smul.addr %s25, 8
          %s1652 = scalar_lea.hbm %s4, %s1651
          %s1654 = sshll.u32 %s1631, 4
          %s1655 = int_to_ptr.vmem [resolvable:$true] %s1654
          %s1656 = sshll.u32 %s1652, 4
          %s1657 = int_to_ptr.hbm [resolvable:$true] %s1656
          %1659 = dma.vmem_to_hbm [thread:$0]  %s1655, 128, %s1657, %s1628
        $region44: #{tpu_custom_call.1} parent=31 // pred_fallthru
          _
      $region32: #{tpu_custom_call.1} parent=5 // pred_fallthru
        _
      %p1660 = scmp.le.s32.totalorder 2, %s20
      // Predicated region
      $region45: #{tpu_custom_call.1} parent=5 // pred_check
        %p1661 = pneg %p1660
      $region46: #{tpu_custom_call.1} parent=5 // pred_check_branch
        %1663 = sbr.rel (%p1661) target = $region48
      $region47: #{tpu_custom_call.1} parent=5 // pred_region
        %s1664 = ssub.s32 %s20, 2
        // Predicated region
        $region49: #{tpu_custom_call.1} parent=47 // pred_check
          %p1665 = pneg %p122
        $region50: #{tpu_custom_call.1} parent=47 // pred_check_branch
          %1667 = sbr.rel (%p1665) target = $region52
        $region51: #{tpu_custom_call.1} parent=47 // pred_region
          %s1668 = sand.u32 %s107, 1
          %s1669 = scalar_lea.sflag [#allocation4], %s1668
          %s1670 = sand.u32 %s107, 1
          %s1671 = smul.addr %s1670, 8
          %s1672 = scalar_lea.vmem [#allocation5], %s1671
          %1674 = dma.done %s1669, 128
        $region52: #{tpu_custom_call.1} parent=47 // pred_fallthru
          _
        // Predicated region
        $region53: #{tpu_custom_call.1} parent=47 // pred_check
          %p1675 = pneg %p148
        $region54: #{tpu_custom_call.1} parent=47 // pred_check_branch
          %1677 = sbr.rel (%p1675) target = $region56
        $region55: #{tpu_custom_call.1} parent=47 // pred_region
          %s1678 = sand.u32 %s133, 1
          %s1679 = scalar_lea.sflag [#allocation7], %s1678
          %s1680 = sand.u32 %s133, 1
          %s1681 = smul.addr %s1680, 8
          %s1682 = scalar_lea.vmem [#allocation6], %s1681
          %1684 = dma.done %s1679, 128
        $region56: #{tpu_custom_call.1} parent=47 // pred_fallthru
          _
      $region48: #{tpu_custom_call.1} parent=5 // pred_fallthru
        _
    $region6: #{tpu_custom_call.1} parent=1 // loop_footer
      %s24 = sadd.s32 1, %s20
    $region7: #{tpu_custom_call.1} parent=1 // loop_footer_branch
      %19 = sbr.rel target = $region3
    $region8: #{tpu_custom_call.1} parent=1 // loop_exit
      _
    %1685 = vsyncpa [#allocation3], 1
    %s1686 = scalar_lea.sflag [#allocation3], 1
    %1687 = vsyncpa %s1686, 1
    %1688 = vsyncpa [#allocation4], 1
    %s1689 = scalar_lea.sflag [#allocation4], 1
    %1690 = vsyncpa %s1689, 1
    %1691 = vsyncpa [#allocation7], 1
    %s1692 = scalar_lea.sflag [#allocation7], 1
    %1693 = vsyncpa %s1692, 1

</llo_original>
